<compile_context>
chip_gen: v6e
topology: v6e:2x2x1
jax: 0.10.0
libtpu: 0.0.40
codegen_flags: <defaults>
</compile_context>

<pallas_src>
import jax
import jax.numpy as jnp
from jax.experimental import pallas as pl
from jax.experimental.pallas import tpu as pltpu

BP = 8  # sublane group: batch is padded to this inside the kernel


# ----------------------------- Fused kernel -------------------------------- #

def make_fused_kernel(num_layers, T, Bp):
    """Build the fused kernel body for static (num_layers, T, Bp)."""

    def kernel(*refs):
        # Inputs.
        x_ref = refs[0]                             # (T*Bp, isz) time-major slab
        h0_ref = refs[1]                            # (L, Bp, H)
        layer_refs = refs[2:2 + 3 * num_layers]     # per layer: Wih^T, Whh^T, bias
        fcw_ref = refs[2 + 3 * num_layers]          # (H, O)
        fcb_ref = refs[3 + 3 * num_layers]          # (1, O)
        # Outputs.
        o_ref = refs[4 + 3 * num_layers]            # (T*Bp, O) softmax probs
        hout_ref = refs[5 + 3 * num_layers]         # (L, Bp, H) final hidden

        # Hoist all (tiny) weight / bias loads out of the unrolled loops.
        wih = [layer_refs[3 * l][...] for l in range(num_layers)]       # (Din, H)
        whh = [layer_refs[3 * l + 1][...] for l in range(num_layers)]   # (H, H)
        bias = [layer_refs[3 * l + 2][...] for l in range(num_layers)]  # (1, H)

        # Layer 0 input projection hoisted off the recurrence: ONE MXU matmul
        # over all T*Bp rows, bias added once.
        xw0 = jnp.dot(x_ref[...], wih[0],
                      preferred_element_type=jnp.float32) + bias[0]     # (T*Bp, H)

        # Hidden state per layer, carried as values (vregs, never re-stored).
        h = [h0_ref[l] for l in range(num_layers)]                       # (Bp, H)

        hs_last = []  # last layer's per-step hidden states (aligned (Bp,H) tiles)
        # Time-outer / layer-inner unroll: layer l step t depends only on
        # (l-1, t) and (l, t-1), so the unrolled DAG has a T+L-1 critical path
        # and the scheduler can keep one MXU push per layer in flight.
        for t in range(T):
            # Layer 0: sublane-aligned slice (t*8 offset) + recurrent matmul.
            pre0 = xw0[t * Bp:(t + 1) * Bp, :] + jnp.dot(
                h[0], whh[0], preferred_element_type=jnp.float32)
            h[0] = jnp.tanh(pre0)
            h_in = h[0]
            # Inner layers: per-step input + hidden projections (two small,
            # mutually independent MXU pushes) + bias + tanh.
            for l in range(1, num_layers):
                pre = (jnp.dot(h_in, wih[l], preferred_element_type=jnp.float32)
                       + jnp.dot(h[l], whh[l], preferred_element_type=jnp.float32)
                       + bias[l])
                h[l] = jnp.tanh(pre)
                h_in = h[l]
            hs_last.append(h_in)

        # Final hidden state per layer: aligned (Bp, H) stores.
        for l in range(num_layers):
            hout_ref[l] = h[l]

        # Head: ONE matmul + ONE softmax over the whole (T*Bp, O) slab and a
        # single contiguous store (batch-first re-layout is done in the
        # wrapper by XLA on a few hundred bytes).
        seq = jnp.concatenate(hs_last, axis=0)                          # (T*Bp, H)
        logits = jnp.dot(seq, fcw_ref[...],
                         preferred_element_type=jnp.float32) + fcb_ref[...]
        m = jnp.max(logits, axis=-1, keepdims=True)
        e = jnp.exp(logits - m)
        probs = e / jnp.sum(e, axis=-1, keepdims=True)
        o_ref[...] = probs.astype(o_ref.dtype)

    return kernel


# ------------------------------ Wrapper ------------------------------------ #

def prepare_params(params):
    """One-time parameter prep (hoisted out of the per-call path):
       transpose weights, fold b_ih + b_hh."""
    prepped = {"layers": []}
    for layer in params["rnn"]:
        prepped["layers"].append((
            jnp.transpose(layer["w_ih"]),                    # (Din, H)
            jnp.transpose(layer["w_hh"]),                    # (H, H)
            (layer["b_ih"] + layer["b_hh"])[None, :],        # (1, H)
        ))
    prepped["fc_w_t"] = jnp.transpose(params["fc_w"])        # (H, O)
    prepped["fc_b"] = params["fc_b"][None, :]                # (1, O)
    return prepped


def rc_action_model4_forward(x, h, prepped):
    """x: (B, T, isz) batch-first, h: (L, B, H). Returns (o, h_out):
       o: (B, T, osz), h_out: (L, B, H)."""
    B, T, isz = x.shape
    L = len(prepped["layers"])
    H = prepped["layers"][0][1].shape[0]
    O = prepped["fc_w_t"].shape[1]
    Bp = BP

    # Time-major, batch padded to a full sublane group (Bp=8) so every
    # per-step operand in the kernel is a whole, aligned (8, H) tile.
    x_tm = jnp.transpose(x, (1, 0, 2))                                   # (T, B, isz)
    x_pad = jnp.zeros((T, Bp, isz), x.dtype).at[:, :B].set(x_tm)
    x_pad = x_pad.reshape(T * Bp, isz)
    h_pad = jnp.zeros((L, Bp, H), h.dtype).at[:, :B].set(h)

    args = [x_pad, h_pad]
    for (wih_t, whh_t, bias) in prepped["layers"]:
        args += [wih_t, whh_t, bias]
    args += [prepped["fc_w_t"], prepped["fc_b"]]

    vmem = pl.BlockSpec(memory_space=pltpu.MemorySpace.VMEM)
    o_flat, h_out_pad = pl.pallas_call(
        make_fused_kernel(L, T, Bp),
        out_shape=(jax.ShapeDtypeStruct((T * Bp, O), jnp.float32),
                   jax.ShapeDtypeStruct((L, Bp, H), jnp.float32)),
        in_specs=[vmem] * len(args),
        out_specs=(vmem, vmem),
    )(*args)

    # Tiny XLA re-layout (a few hundred bytes): drop batch padding, go
    # batch-first.
    o = jnp.transpose(o_flat.reshape(T, Bp, O)[:, :B], (1, 0, 2))        # (B, T, O)
    h_out = h_out_pad[:, :B]                                             # (L, B, H)
    return o, h_out


# --------------------------- Pure-JAX reference ----------------------------- #

def ref_forward(x, h, params):
    B, T, _ = x.shape
    inp = x
    h_out = []
    for l, layer in enumerate(params["rnn"]):
        hs = h[l]
        outs = []
        for t in range(T):
            hs = jnp.tanh(inp[:, t, :] @ layer["w_ih"].T + layer["b_ih"]
                          + hs @ layer["w_hh"].T + layer["b_hh"])
            outs.append(hs)
        inp = jnp.stack(outs, axis=1)
        h_out.append(hs)
    logits = inp @ params["fc_w"].T + params["fc_b"]
    return jax.nn.softmax(logits, axis=2), jnp.stack(h_out, axis=0)


# ------------------------------ Param init ---------------------------------- #

def init_params(key, isz, osz, hsz, ssz):
    """Deterministic init matching PyTorch shapes (uniform(-1/sqrt(hsz), ..))."""
    k = 1.0 / jnp.sqrt(hsz)
    params = {"rnn": []}
    for l in range(ssz):
        din = isz if l == 0 else hsz
        key, k1, k2, k3, k4 = jax.random.split(key, 5)
        params["rnn"].append({
            "w_ih": jax.random.uniform(k1, (hsz, din), jnp.float32, -k, k),
            "w_hh": jax.random.uniform(k2, (hsz, hsz), jnp.float32, -k, k),
            "b_ih": jax.random.uniform(k3, (hsz,), jnp.float32, -k, k),
            "b_hh": jax.random.uniform(k4, (hsz,), jnp.float32, -k, k),
        })
    key, k1, k2 = jax.random.split(key, 3)
    kf = 1.0 / jnp.sqrt(hsz)
    params["fc_w"] = jax.random.uniform(k1, (osz, hsz), jnp.float32, -kf, kf)
    params["fc_b"] = jax.random.uniform(k2, (osz,), jnp.float32, -kf, kf)
    return params


# --------------------------------- Main ------------------------------------- #

if __name__ == "__main__":
    isz, osz, hsz, ssz = 16, 8, 32, 2     # input, output, hidden, num rnn layers
    B, T = 2, 8

    key = jax.random.PRNGKey(0)
    key, kp, kx = jax.random.split(key, 3)
    params = init_params(kp, isz, osz, hsz, ssz)
    prepped = prepare_params(params)       # one-time weight prep (hoisted)

    x = jax.random.normal(kx, (B, T, isz), jnp.float32)   # batch-first like PyTorch
    h0 = jnp.zeros((ssz, B, hsz), jnp.float32)            # model.init(batch) per layer

    fwd = jax.jit(lambda xx, hh: rc_action_model4_forward(xx, hh, prepped))
    o, h_out = fwd(x, h0)
    o = jax.block_until_ready(o)
    h_out = jax.block_until_ready(h_out)

    o_ref, h_ref = ref_forward(x, h0, params)
    assert o.shape == (B, T, osz) and h_out.shape == (ssz, B, hsz)
    assert jnp.allclose(o, o_ref, atol=1e-5, rtol=1e-5)
    assert jnp.allclose(h_out, h_ref, atol=1e-5, rtol=1e-5)
    assert jnp.allclose(jnp.sum(o, axis=2), 1.0, atol=1e-5)

    print("KERNEL_OK")
</pallas_src>

<mosaic_0001>
module attributes {stable_mosaic.version = 11 : i64} {
  func.func @kernel(%arg0: memref<64x16xf32, #tpu.memory_space<vmem>>, %arg1: memref<2x8x32xf32, #tpu.memory_space<vmem>>, %arg2: memref<16x32xf32, #tpu.memory_space<vmem>>, %arg3: memref<32x32xf32, #tpu.memory_space<vmem>>, %arg4: memref<1x32xf32, #tpu.memory_space<vmem>>, %arg5: memref<32x32xf32, #tpu.memory_space<vmem>>, %arg6: memref<32x32xf32, #tpu.memory_space<vmem>>, %arg7: memref<1x32xf32, #tpu.memory_space<vmem>>, %arg8: memref<32x8xf32, #tpu.memory_space<vmem>>, %arg9: memref<1x8xf32, #tpu.memory_space<vmem>>, %arg10: memref<64x8xf32, #tpu.memory_space<vmem>>, %arg11: memref<2x8x32xf32, #tpu.memory_space<vmem>>) attributes {dimension_semantics = [], scalar_prefetch = 0 : i64, scratch_operands = 0 : i64, tpu.core_type = #tpu.core_type<tc>} {
    %c0 = arith.constant 0 : index
    %c0_0 = arith.constant 0 : index
    %0 = vector.load %arg2[%c0, %c0_0] : memref<16x32xf32, #tpu.memory_space<vmem>>, vector<16x32xf32>
    %c0_1 = arith.constant 0 : index
    %c0_2 = arith.constant 0 : index
    %1 = vector.load %arg5[%c0_1, %c0_2] : memref<32x32xf32, #tpu.memory_space<vmem>>, vector<32x32xf32>
    %c0_3 = arith.constant 0 : index
    %c0_4 = arith.constant 0 : index
    %2 = vector.load %arg3[%c0_3, %c0_4] : memref<32x32xf32, #tpu.memory_space<vmem>>, vector<32x32xf32>
    %c0_5 = arith.constant 0 : index
    %c0_6 = arith.constant 0 : index
    %3 = vector.load %arg6[%c0_5, %c0_6] : memref<32x32xf32, #tpu.memory_space<vmem>>, vector<32x32xf32>
    %c0_7 = arith.constant 0 : index
    %c0_8 = arith.constant 0 : index
    %4 = vector.load %arg4[%c0_7, %c0_8] : memref<1x32xf32, #tpu.memory_space<vmem>>, vector<1x32xf32>
    %c0_9 = arith.constant 0 : index
    %c0_10 = arith.constant 0 : index
    %5 = vector.load %arg7[%c0_9, %c0_10] : memref<1x32xf32, #tpu.memory_space<vmem>>, vector<1x32xf32>
    %c0_11 = arith.constant 0 : index
    %c0_12 = arith.constant 0 : index
    %6 = vector.load %arg0[%c0_11, %c0_12] : memref<64x16xf32, #tpu.memory_space<vmem>>, vector<64x16xf32>
    %cst = arith.constant dense<0.000000e+00> : vector<64x32xf32>
    %7 = tpu.matmul %6, %0, %cst {dimension_numbers = #tpu.dot_dimension_numbers<[1], [0], [0], [1], [0, 0, 1, 1], [], []>} : vector<64x16xf32>, vector<16x32xf32>, vector<64x32xf32> -> vector<64x32xf32>
    %8 = vector.broadcast %4 : vector<1x32xf32> to vector<64x32xf32>
    %9 = arith.addf %7, %8 : vector<64x32xf32>
    %c0_13 = arith.constant 0 : index
    %c0_14 = arith.constant 0 : index
    %c0_15 = arith.constant 0 : index
    %10 = vector.load %arg1[%c0_13, %c0_14, %c0_15] : memref<2x8x32xf32, #tpu.memory_space<vmem>>, vector<1x8x32xf32>
    %11 = vector.shape_cast %10 : vector<1x8x32xf32> to vector<8x32xf32>
    %c1 = arith.constant 1 : index
    %c0_16 = arith.constant 0 : index
    %c0_17 = arith.constant 0 : index
    %12 = vector.load %arg1[%c1, %c0_16, %c0_17] : memref<2x8x32xf32, #tpu.memory_space<vmem>>, vector<1x8x32xf32>
    %13 = vector.shape_cast %12 : vector<1x8x32xf32> to vector<8x32xf32>
    %14 = vector.extract_strided_slice %9 {offsets = [0, 0], sizes = [8, 32], strides = [1, 1]} : vector<64x32xf32> to vector<8x32xf32>
    %cst_18 = arith.constant dense<0.000000e+00> : vector<8x32xf32>
    %15 = tpu.matmul %11, %2, %cst_18 {dimension_numbers = #tpu.dot_dimension_numbers<[1], [0], [0], [1], [0, 0, 1, 1], [], []>} : vector<8x32xf32>, vector<32x32xf32>, vector<8x32xf32> -> vector<8x32xf32>
    %16 = arith.addf %14, %15 : vector<8x32xf32>
    %17 = math.tanh %16 : vector<8x32xf32>
    %cst_19 = arith.constant dense<0.000000e+00> : vector<8x32xf32>
    %18 = tpu.matmul %17, %1, %cst_19 {dimension_numbers = #tpu.dot_dimension_numbers<[1], [0], [0], [1], [0, 0, 1, 1], [], []>} : vector<8x32xf32>, vector<32x32xf32>, vector<8x32xf32> -> vector<8x32xf32>
    %cst_20 = arith.constant dense<0.000000e+00> : vector<8x32xf32>
    %19 = tpu.matmul %13, %3, %cst_20 {dimension_numbers = #tpu.dot_dimension_numbers<[1], [0], [0], [1], [0, 0, 1, 1], [], []>} : vector<8x32xf32>, vector<32x32xf32>, vector<8x32xf32> -> vector<8x32xf32>
    %20 = arith.addf %18, %19 : vector<8x32xf32>
    %21 = vector.broadcast %5 : vector<1x32xf32> to vector<8x32xf32>
    %22 = arith.addf %20, %21 : vector<8x32xf32>
    %23 = math.tanh %22 : vector<8x32xf32>
    %24 = vector.extract_strided_slice %9 {offsets = [8, 0], sizes = [8, 32], strides = [1, 1]} : vector<64x32xf32> to vector<8x32xf32>
    %cst_21 = arith.constant dense<0.000000e+00> : vector<8x32xf32>
    %25 = tpu.matmul %17, %2, %cst_21 {dimension_numbers = #tpu.dot_dimension_numbers<[1], [0], [0], [1], [0, 0, 1, 1], [], []>} : vector<8x32xf32>, vector<32x32xf32>, vector<8x32xf32> -> vector<8x32xf32>
    %26 = arith.addf %24, %25 : vector<8x32xf32>
    %27 = math.tanh %26 : vector<8x32xf32>
    %cst_22 = arith.constant dense<0.000000e+00> : vector<8x32xf32>
    %28 = tpu.matmul %27, %1, %cst_22 {dimension_numbers = #tpu.dot_dimension_numbers<[1], [0], [0], [1], [0, 0, 1, 1], [], []>} : vector<8x32xf32>, vector<32x32xf32>, vector<8x32xf32> -> vector<8x32xf32>
    %cst_23 = arith.constant dense<0.000000e+00> : vector<8x32xf32>
    %29 = tpu.matmul %23, %3, %cst_23 {dimension_numbers = #tpu.dot_dimension_numbers<[1], [0], [0], [1], [0, 0, 1, 1], [], []>} : vector<8x32xf32>, vector<32x32xf32>, vector<8x32xf32> -> vector<8x32xf32>
    %30 = arith.addf %28, %29 : vector<8x32xf32>
    %31 = vector.broadcast %5 : vector<1x32xf32> to vector<8x32xf32>
    %32 = arith.addf %30, %31 : vector<8x32xf32>
    %33 = math.tanh %32 : vector<8x32xf32>
    %34 = vector.extract_strided_slice %9 {offsets = [16, 0], sizes = [8, 32], strides = [1, 1]} : vector<64x32xf32> to vector<8x32xf32>
    %cst_24 = arith.constant dense<0.000000e+00> : vector<8x32xf32>
    %35 = tpu.matmul %27, %2, %cst_24 {dimension_numbers = #tpu.dot_dimension_numbers<[1], [0], [0], [1], [0, 0, 1, 1], [], []>} : vector<8x32xf32>, vector<32x32xf32>, vector<8x32xf32> -> vector<8x32xf32>
    %36 = arith.addf %34, %35 : vector<8x32xf32>
    %37 = math.tanh %36 : vector<8x32xf32>
    %cst_25 = arith.constant dense<0.000000e+00> : vector<8x32xf32>
    %38 = tpu.matmul %37, %1, %cst_25 {dimension_numbers = #tpu.dot_dimension_numbers<[1], [0], [0], [1], [0, 0, 1, 1], [], []>} : vector<8x32xf32>, vector<32x32xf32>, vector<8x32xf32> -> vector<8x32xf32>
    %cst_26 = arith.constant dense<0.000000e+00> : vector<8x32xf32>
    %39 = tpu.matmul %33, %3, %cst_26 {dimension_numbers = #tpu.dot_dimension_numbers<[1], [0], [0], [1], [0, 0, 1, 1], [], []>} : vector<8x32xf32>, vector<32x32xf32>, vector<8x32xf32> -> vector<8x32xf32>
    %40 = arith.addf %38, %39 : vector<8x32xf32>
    %41 = vector.broadcast %5 : vector<1x32xf32> to vector<8x32xf32>
    %42 = arith.addf %40, %41 : vector<8x32xf32>
    %43 = math.tanh %42 : vector<8x32xf32>
    %44 = vector.extract_strided_slice %9 {offsets = [24, 0], sizes = [8, 32], strides = [1, 1]} : vector<64x32xf32> to vector<8x32xf32>
    %cst_27 = arith.constant dense<0.000000e+00> : vector<8x32xf32>
    %45 = tpu.matmul %37, %2, %cst_27 {dimension_numbers = #tpu.dot_dimension_numbers<[1], [0], [0], [1], [0, 0, 1, 1], [], []>} : vector<8x32xf32>, vector<32x32xf32>, vector<8x32xf32> -> vector<8x32xf32>
    %46 = arith.addf %44, %45 : vector<8x32xf32>
    %47 = math.tanh %46 : vector<8x32xf32>
    %cst_28 = arith.constant dense<0.000000e+00> : vector<8x32xf32>
    %48 = tpu.matmul %47, %1, %cst_28 {dimension_numbers = #tpu.dot_dimension_numbers<[1], [0], [0], [1], [0, 0, 1, 1], [], []>} : vector<8x32xf32>, vector<32x32xf32>, vector<8x32xf32> -> vector<8x32xf32>
    %cst_29 = arith.constant dense<0.000000e+00> : vector<8x32xf32>
    %49 = tpu.matmul %43, %3, %cst_29 {dimension_numbers = #tpu.dot_dimension_numbers<[1], [0], [0], [1], [0, 0, 1, 1], [], []>} : vector<8x32xf32>, vector<32x32xf32>, vector<8x32xf32> -> vector<8x32xf32>
    %50 = arith.addf %48, %49 : vector<8x32xf32>
    %51 = vector.broadcast %5 : vector<1x32xf32> to vector<8x32xf32>
    %52 = arith.addf %50, %51 : vector<8x32xf32>
    %53 = math.tanh %52 : vector<8x32xf32>
    %54 = vector.extract_strided_slice %9 {offsets = [32, 0], sizes = [8, 32], strides = [1, 1]} : vector<64x32xf32> to vector<8x32xf32>
    %cst_30 = arith.constant dense<0.000000e+00> : vector<8x32xf32>
    %55 = tpu.matmul %47, %2, %cst_30 {dimension_numbers = #tpu.dot_dimension_numbers<[1], [0], [0], [1], [0, 0, 1, 1], [], []>} : vector<8x32xf32>, vector<32x32xf32>, vector<8x32xf32> -> vector<8x32xf32>
    %56 = arith.addf %54, %55 : vector<8x32xf32>
    %57 = math.tanh %56 : vector<8x32xf32>
    %cst_31 = arith.constant dense<0.000000e+00> : vector<8x32xf32>
    %58 = tpu.matmul %57, %1, %cst_31 {dimension_numbers = #tpu.dot_dimension_numbers<[1], [0], [0], [1], [0, 0, 1, 1], [], []>} : vector<8x32xf32>, vector<32x32xf32>, vector<8x32xf32> -> vector<8x32xf32>
    %cst_32 = arith.constant dense<0.000000e+00> : vector<8x32xf32>
    %59 = tpu.matmul %53, %3, %cst_32 {dimension_numbers = #tpu.dot_dimension_numbers<[1], [0], [0], [1], [0, 0, 1, 1], [], []>} : vector<8x32xf32>, vector<32x32xf32>, vector<8x32xf32> -> vector<8x32xf32>
    %60 = arith.addf %58, %59 : vector<8x32xf32>
    %61 = vector.broadcast %5 : vector<1x32xf32> to vector<8x32xf32>
    %62 = arith.addf %60, %61 : vector<8x32xf32>
    %63 = math.tanh %62 : vector<8x32xf32>
    %64 = vector.extract_strided_slice %9 {offsets = [40, 0], sizes = [8, 32], strides = [1, 1]} : vector<64x32xf32> to vector<8x32xf32>
    %cst_33 = arith.constant dense<0.000000e+00> : vector<8x32xf32>
    %65 = tpu.matmul %57, %2, %cst_33 {dimension_numbers = #tpu.dot_dimension_numbers<[1], [0], [0], [1], [0, 0, 1, 1], [], []>} : vector<8x32xf32>, vector<32x32xf32>, vector<8x32xf32> -> vector<8x32xf32>
    %66 = arith.addf %64, %65 : vector<8x32xf32>
    %67 = math.tanh %66 : vector<8x32xf32>
    %cst_34 = arith.constant dense<0.000000e+00> : vector<8x32xf32>
    %68 = tpu.matmul %67, %1, %cst_34 {dimension_numbers = #tpu.dot_dimension_numbers<[1], [0], [0], [1], [0, 0, 1, 1], [], []>} : vector<8x32xf32>, vector<32x32xf32>, vector<8x32xf32> -> vector<8x32xf32>
    %cst_35 = arith.constant dense<0.000000e+00> : vector<8x32xf32>
    %69 = tpu.matmul %63, %3, %cst_35 {dimension_numbers = #tpu.dot_dimension_numbers<[1], [0], [0], [1], [0, 0, 1, 1], [], []>} : vector<8x32xf32>, vector<32x32xf32>, vector<8x32xf32> -> vector<8x32xf32>
    %70 = arith.addf %68, %69 : vector<8x32xf32>
    %71 = vector.broadcast %5 : vector<1x32xf32> to vector<8x32xf32>
    %72 = arith.addf %70, %71 : vector<8x32xf32>
    %73 = math.tanh %72 : vector<8x32xf32>
    %74 = vector.extract_strided_slice %9 {offsets = [48, 0], sizes = [8, 32], strides = [1, 1]} : vector<64x32xf32> to vector<8x32xf32>
    %cst_36 = arith.constant dense<0.000000e+00> : vector<8x32xf32>
    %75 = tpu.matmul %67, %2, %cst_36 {dimension_numbers = #tpu.dot_dimension_numbers<[1], [0], [0], [1], [0, 0, 1, 1], [], []>} : vector<8x32xf32>, vector<32x32xf32>, vector<8x32xf32> -> vector<8x32xf32>
    %76 = arith.addf %74, %75 : vector<8x32xf32>
    %77 = math.tanh %76 : vector<8x32xf32>
    %cst_37 = arith.constant dense<0.000000e+00> : vector<8x32xf32>
    %78 = tpu.matmul %77, %1, %cst_37 {dimension_numbers = #tpu.dot_dimension_numbers<[1], [0], [0], [1], [0, 0, 1, 1], [], []>} : vector<8x32xf32>, vector<32x32xf32>, vector<8x32xf32> -> vector<8x32xf32>
    %cst_38 = arith.constant dense<0.000000e+00> : vector<8x32xf32>
    %79 = tpu.matmul %73, %3, %cst_38 {dimension_numbers = #tpu.dot_dimension_numbers<[1], [0], [0], [1], [0, 0, 1, 1], [], []>} : vector<8x32xf32>, vector<32x32xf32>, vector<8x32xf32> -> vector<8x32xf32>
    %80 = arith.addf %78, %79 : vector<8x32xf32>
    %81 = vector.broadcast %5 : vector<1x32xf32> to vector<8x32xf32>
    %82 = arith.addf %80, %81 : vector<8x32xf32>
    %83 = math.tanh %82 : vector<8x32xf32>
    %84 = vector.extract_strided_slice %9 {offsets = [56, 0], sizes = [8, 32], strides = [1, 1]} : vector<64x32xf32> to vector<8x32xf32>
    %cst_39 = arith.constant dense<0.000000e+00> : vector<8x32xf32>
    %85 = tpu.matmul %77, %2, %cst_39 {dimension_numbers = #tpu.dot_dimension_numbers<[1], [0], [0], [1], [0, 0, 1, 1], [], []>} : vector<8x32xf32>, vector<32x32xf32>, vector<8x32xf32> -> vector<8x32xf32>
    %86 = arith.addf %84, %85 : vector<8x32xf32>
    %87 = math.tanh %86 : vector<8x32xf32>
    %cst_40 = arith.constant dense<0.000000e+00> : vector<8x32xf32>
    %88 = tpu.matmul %87, %1, %cst_40 {dimension_numbers = #tpu.dot_dimension_numbers<[1], [0], [0], [1], [0, 0, 1, 1], [], []>} : vector<8x32xf32>, vector<32x32xf32>, vector<8x32xf32> -> vector<8x32xf32>
    %cst_41 = arith.constant dense<0.000000e+00> : vector<8x32xf32>
    %89 = tpu.matmul %83, %3, %cst_41 {dimension_numbers = #tpu.dot_dimension_numbers<[1], [0], [0], [1], [0, 0, 1, 1], [], []>} : vector<8x32xf32>, vector<32x32xf32>, vector<8x32xf32> -> vector<8x32xf32>
    %90 = arith.addf %88, %89 : vector<8x32xf32>
    %91 = vector.broadcast %5 : vector<1x32xf32> to vector<8x32xf32>
    %92 = arith.addf %90, %91 : vector<8x32xf32>
    %93 = math.tanh %92 : vector<8x32xf32>
    %c0_42 = arith.constant 0 : index
    %c0_43 = arith.constant 0 : index
    %c0_44 = arith.constant 0 : index
    %94 = vector.load %arg11[%c0_42, %c0_43, %c0_44] : memref<2x8x32xf32, #tpu.memory_space<vmem>>, vector<1x8x32xf32>
    %95 = vector.shape_cast %94 : vector<1x8x32xf32> to vector<8x32xf32>
    %96 = vector.shape_cast %87 : vector<8x32xf32> to vector<1x8x32xf32>
    tpu.vector_store %arg11[%c0_42, %c0_43, %c0_44], %96 {strides = array<i32>} : memref<2x8x32xf32, #tpu.memory_space<vmem>>, vector<1x8x32xf32>,
    %c1_45 = arith.constant 1 : index
    %c0_46 = arith.constant 0 : index
    %c0_47 = arith.constant 0 : index
    %97 = vector.load %arg11[%c1_45, %c0_46, %c0_47] : memref<2x8x32xf32, #tpu.memory_space<vmem>>, vector<1x8x32xf32>
    %98 = vector.shape_cast %97 : vector<1x8x32xf32> to vector<8x32xf32>
    %99 = vector.shape_cast %93 : vector<8x32xf32> to vector<1x8x32xf32>
    tpu.vector_store %arg11[%c1_45, %c0_46, %c0_47], %99 {strides = array<i32>} : memref<2x8x32xf32, #tpu.memory_space<vmem>>, vector<1x8x32xf32>,
    %100 = tpu.concatenate %23, %33, %43, %53, %63, %73, %83, %93 in 0 : vector<8x32xf32>, vector<8x32xf32>, vector<8x32xf32>, vector<8x32xf32>, vector<8x32xf32>, vector<8x32xf32>, vector<8x32xf32>, vector<8x32xf32> -> vector<64x32xf32>
    %c0_48 = arith.constant 0 : index
    %c0_49 = arith.constant 0 : index
    %101 = vector.load %arg8[%c0_48, %c0_49] : memref<32x8xf32, #tpu.memory_space<vmem>>, vector<32x8xf32>
    %cst_50 = arith.constant dense<0.000000e+00> : vector<64x8xf32>
    %102 = tpu.matmul %100, %101, %cst_50 {dimension_numbers = #tpu.dot_dimension_numbers<[1], [0], [0], [1], [0, 0, 1, 1], [], []>} : vector<64x32xf32>, vector<32x8xf32>, vector<64x8xf32> -> vector<64x8xf32>
    %c0_51 = arith.constant 0 : index
    %c0_52 = arith.constant 0 : index
    %103 = vector.load %arg9[%c0_51, %c0_52] : memref<1x8xf32, #tpu.memory_space<vmem>>, vector<1x8xf32>
    %104 = vector.broadcast %103 : vector<1x8xf32> to vector<64x8xf32>
    %105 = arith.addf %102, %104 : vector<64x8xf32>
    %cst_53 = arith.constant dense<0xFF800000> : vector<64xf32>
    %106 = vector.multi_reduction <maximumf>, %105, %cst_53 [1] : vector<64x8xf32> to vector<64xf32>
    %107 = vector.shape_cast %106 : vector<64xf32> to vector<64x1xf32>
    %108 = vector.broadcast %107 : vector<64x1xf32> to vector<64x8xf32>
    %109 = arith.subf %105, %108 : vector<64x8xf32>
    %110 = math.exp %109 : vector<64x8xf32>
    %cst_54 = arith.constant dense<0.000000e+00> : vector<64xf32>
    %111 = vector.multi_reduction <add>, %110, %cst_54 [1] : vector<64x8xf32> to vector<64xf32>
    %112 = vector.shape_cast %111 : vector<64xf32> to vector<64x1xf32>
    %113 = vector.broadcast %112 : vector<64x1xf32> to vector<64x8xf32>
    %114 = arith.divf %110, %113 : vector<64x8xf32>
    %c0_55 = arith.constant 0 : index
    %c0_56 = arith.constant 0 : index
    %115 = vector.load %arg10[%c0_55, %c0_56] : memref<64x8xf32, #tpu.memory_space<vmem>>, vector<64x8xf32>
    tpu.vector_store %arg10[%c0_55, %c0_56], %114 {strides = array<i32>} : memref<64x8xf32, #tpu.memory_space<vmem>>, vector<64x8xf32>,
    return
  }
}

</mosaic_0001>

<llo_original>
// kernel: _lambda_.1
$region0: #{_lambda_.1}
  #allocation0 [shape = 'u32[]', space=smem, size = 0x4, offset = 0x4, fixed_abs, tag = 'smem constant byte address 0x4 - core index']
  #allocation1 [shape = 'u32[144,128]{1,0:T(1,128)}', space=vmem, size = 0x12000, scoped, tag = 'internal scratch']
  %s0 = inlined_call_operand.vmem [shape: f32[64,16], index: 0, kind: input, shape index: {}]
  %s1 = inlined_call_operand.vmem [shape: f32[2,8,32], index: 1, kind: input, shape index: {}]
  %s2 = inlined_call_operand.hbm [shape: f32[16,32], index: 2, kind: input, shape index: {}]
  %s3 = inlined_call_operand.vmem [shape: f32[32,32], index: 3, kind: input, shape index: {}]
  %s4 = inlined_call_operand.vmem [shape: f32[1,32], index: 4, kind: input, shape index: {}]
  %s5 = inlined_call_operand.vmem [shape: f32[32,32], index: 5, kind: input, shape index: {}]
  %s6 = inlined_call_operand.vmem [shape: f32[32,32], index: 6, kind: input, shape index: {}]
  %s7 = inlined_call_operand.vmem [shape: f32[1,32], index: 7, kind: input, shape index: {}]
  %s8 = inlined_call_operand.vmem [shape: f32[32,8], index: 8, kind: input, shape index: {}]
  %s9 = inlined_call_operand.vmem [shape: f32[1,8], index: 9, kind: input, shape index: {}]
  %s10 = inlined_call_operand.vmem [shape: f32[64,8], index: 10, kind: output, shape index: {0}]
  %s11 = inlined_call_operand.vmem [shape: f32[2,8,32], index: 11, kind: output, shape index: {1}]
  %12 = xla_tuple %s10, %s11
  %s13 = sld [smem:[#allocation0]]
  $region62: #{_lambda_.1} parent=0
    _
  %s15 = ssub.s32 1, %s13
  %s16 = scalar_select 0, %s15, %s13
  $region1: #{_lambda_.1} parent=0
    #allocation2 [shape = 'u8[8192]{0}', space=vmem, size = 0x2000, scoped, tag = 'input window, operand 2, single buffered']
    #allocation3 [shape = 's32[1]{0}', space=sflag, size = 0x4, scoped, tag = 'scoped memory for _lambda_.1']
    %17 = vsyncpa [#allocation3], 0
    // Predicated region
    $region2: #{_lambda_.1} parent=1 // pred_check
      _
    $region3: #{_lambda_.1} parent=1 // pred_check_branch
      %19 = sbr.rel (0) target = $region5
    $region4: #{_lambda_.1} parent=1 // pred_region
      _
    $region5: #{_lambda_.1} parent=1 // pred_fallthru
      _
    // Predicated region
    $region6: #{_lambda_.1} parent=1 // pred_check
      _
    $region7: #{_lambda_.1} parent=1 // pred_check_branch
      %21 = sbr.rel (0) target = $region9
    $region8: #{_lambda_.1} parent=1 // pred_region
      _
    $region9: #{_lambda_.1} parent=1 // pred_fallthru
      _
    // Predicated region
    $region10: #{_lambda_.1} parent=1 // pred_check
      _
    $region11: #{_lambda_.1} parent=1 // pred_check_branch
      %23 = sbr.rel (0) target = $region13
    $region12: #{_lambda_.1} parent=1 // pred_region
      %s25 = ssub.s32 256, 256
      %26 = vsyncadd [#allocation3], %s25
      %s27 = sshll.u32 [#allocation2], 4
      %s28 = int_to_ptr.vmem [resolvable:$true] %s27
      %33 = dma.hbm_to_vmem [thread:$0]  %s2, 256, %s28, [#allocation3], 128, 128, 8
    $region13: #{_lambda_.1} parent=1 // pred_fallthru
      _
    // Predicated region
    $region14: #{_lambda_.1} parent=1 // pred_check
      _
    $region15: #{_lambda_.1} parent=1 // pred_check_branch
      %35 = sbr.rel (0) target = $region17
    $region16: #{_lambda_.1} parent=1 // pred_region
      _
    $region17: #{_lambda_.1} parent=1 // pred_fallthru
      _
    // Predicated region
    $region18: #{_lambda_.1} parent=1 // pred_check
      _
    $region19: #{_lambda_.1} parent=1 // pred_check_branch
      %37 = sbr.rel (0) target = $region21
    $region20: #{_lambda_.1} parent=1 // pred_region
      _
    $region21: #{_lambda_.1} parent=1 // pred_fallthru
      _
    // Predicated region
    $region22: #{_lambda_.1} parent=1 // pred_check
      _
    $region23: #{_lambda_.1} parent=1 // pred_check_branch
      %39 = sbr.rel (0) target = $region25
    $region24: #{_lambda_.1} parent=1 // pred_region
      _
    $region25: #{_lambda_.1} parent=1 // pred_fallthru
      _
    // Predicated region
    $region26: #{_lambda_.1} parent=1 // pred_check
      _
    $region27: #{_lambda_.1} parent=1 // pred_check_branch
      %41 = sbr.rel (0) target = $region29
    $region28: #{_lambda_.1} parent=1 // pred_region
      _
    $region29: #{_lambda_.1} parent=1 // pred_fallthru
      _
    // Predicated region
    $region30: #{_lambda_.1} parent=1 // pred_check
      _
    $region31: #{_lambda_.1} parent=1 // pred_check_branch
      %43 = sbr.rel (0) target = $region33
    $region32: #{_lambda_.1} parent=1 // pred_region
      _
    $region33: #{_lambda_.1} parent=1 // pred_fallthru
      _
    // Predicated region
    $region34: #{_lambda_.1} parent=1 // pred_check
      _
    $region35: #{_lambda_.1} parent=1 // pred_check_branch
      %45 = sbr.rel (0) target = $region37
    $region36: #{_lambda_.1} parent=1 // pred_region
      _
    $region37: #{_lambda_.1} parent=1 // pred_fallthru
      _
    // Predicated region
    $region38: #{_lambda_.1} parent=1 // pred_check
      _
    $region39: #{_lambda_.1} parent=1 // pred_check_branch
      %47 = sbr.rel (0) target = $region41
    $region40: #{_lambda_.1} parent=1 // pred_region
      _
    $region41: #{_lambda_.1} parent=1 // pred_fallthru
      _
    // Predicated region
    $region42: #{_lambda_.1} parent=1 // pred_check
      _
    $region43: #{_lambda_.1} parent=1 // pred_check_branch
      %49 = sbr.rel (0) target = $region45
    $region44: #{_lambda_.1} parent=1 // pred_region
      %50 = dma.done [#allocation3], 256
    $region45: #{_lambda_.1} parent=1 // pred_fallthru
      _
    %v51 = vld [vmem:[#allocation2] sm:$0xff]
    %v52 = vld [vmem:[#allocation2 + $0x8] sm:$0xff]
    %v53 = vld [vmem:[%s5] sm:$0xff]
    %v54 = vld [vmem:[%s5 + $0x8] sm:$0xff]
    %v55 = vld [vmem:[%s5 + $0x10] sm:$0xff]
    %v56 = vld [vmem:[%s5 + $0x18] sm:$0xff]
    %v57 = vld [vmem:[%s3] sm:$0xff]
    %v58 = vld [vmem:[%s3 + $0x8] sm:$0xff]
    %v59 = vld [vmem:[%s3 + $0x10] sm:$0xff]
    %v60 = vld [vmem:[%s3 + $0x18] sm:$0xff]
    %v61 = vld [vmem:[%s6] sm:$0xff]
    %v62 = vld [vmem:[%s6 + $0x8] sm:$0xff]
    %v63 = vld [vmem:[%s6 + $0x10] sm:$0xff]
    %v64 = vld [vmem:[%s6 + $0x18] sm:$0xff]
    %v65 = vld [vmem:[%s4] sm:$0x1]
    %v66 = vld [vmem:[%s7] sm:$0x1]
    %v67 = vld [vmem:[%s0] sm:$0xff]
    %v68 = vld [vmem:[%s0 + $0x8] sm:$0xff]
    %v69 = vld [vmem:[%s0 + $0x10] sm:$0xff]
    %v70 = vld [vmem:[%s0 + $0x18] sm:$0xff]
    %v71 = vld [vmem:[%s0 + $0x20] sm:$0xff]
    %v72 = vld [vmem:[%s0 + $0x28] sm:$0xff]
    %v73 = vld [vmem:[%s0 + $0x30] sm:$0xff]
    %v74 = vld [vmem:[%s0 + $0x38] sm:$0xff]
    %v76 = vlaneseq
    %v77 = vshrl.u32 %v76, 7
    %v78 = vsub.s32 0, %v77
    %v79 = vrot.slane %v65, %v78
    %vm81 = vcmask 130048
    %v83 = vsel %vm81, %v67, 0
    %v86 = vsel %vm81, %v68, 0
    %v89 = vsel %vm81, %v69, 0
    %v92 = vsel %vm81, %v70, 0
    %v95 = vsel %vm81, %v71, 0
    %v98 = vsel %vm81, %v72, 0
    %v101 = vsel %vm81, %v73, 0
    %v104 = vsel %vm81, %v74, 0
    %106 = vmatprep.subr.mxu0 0.0
    %107 = vmatpush1.msra.mxu0 0.0
    %108 = vmatprep.subr.mxu0 0.0
    %109 = vmatpush1.msra.mxu0 0.0
    %110 = vmatprep.subr.mxu0 0.0
    %111 = vmatpush1.msra.mxu0 0.0
    %112 = vmatprep.subr.mxu0 0.0
    %113 = vmatpush1.msra.mxu0 0.0
    %114 = vmatprep.subr.mxu0 0.0
    %115 = vmatpush1.msra.mxu0 0.0
    %116 = vmatprep.subr.mxu0 0.0
    %117 = vmatpush1.msra.mxu0 0.0
    %118 = vmatprep.subr.mxu0 0.0
    %119 = vmatpush1.msra.mxu0 0.0
    %120 = vmatprep.subr.mxu0 0.0
    %121 = vmatpush1.msra.mxu0 0.0
    %122 = vmatprep.subr.mxu0 0.0
    %123 = vmatpush1.msra.mxu0 0.0
    %124 = vmatprep.subr.mxu0 0.0
    %125 = vmatpush1.msra.mxu0 0.0
    %126 = vmatprep.subr.mxu0 0.0
    %127 = vmatpush1.msra.mxu0 0.0
    %128 = vmatprep.subr.mxu0 0.0
    %129 = vmatpush1.msra.mxu0 0.0
    %130 = vmatprep.subr.mxu0 0.0
    %131 = vmatpush1.msra.mxu0 0.0
    %132 = vmatprep.subr.mxu0 0.0
    %133 = vmatpush1.msra.mxu0 0.0
    %134 = vmatprep.subr.mxu0 0.0
    %135 = vmatpush1.msra.mxu0 %v52
    %136 = vmatprep.subr.mxu0 0.0
    %137 = vmatpush1.msra.mxu0 %v51
    %138 = vmatprep.subr.mxu0 0.0
    %139 = vmatpush2.msra.mxu0 0.0
    %140 = vmatprep.subr.mxu0 0.0
    %141 = vmatpush2.msra.mxu0 0.0
    %142 = vmatprep.subr.mxu0 0.0
    %143 = vmatpush2.msra.mxu0 0.0
    %144 = vmatprep.subr.mxu0 0.0
    %145 = vmatpush2.msra.mxu0 0.0
    %146 = vmatprep.subr.mxu0 0.0
    %147 = vmatpush2.msra.mxu0 0.0
    %148 = vmatprep.subr.mxu0 0.0
    %149 = vmatpush2.msra.mxu0 0.0
    %150 = vmatprep.subr.mxu0 0.0
    %151 = vmatpush2.msra.mxu0 0.0
    %152 = vmatprep.subr.mxu0 0.0
    %153 = vmatpush2.msra.mxu0 0.0
    %154 = vmatprep.subr.mxu0 0.0
    %155 = vmatpush2.msra.mxu0 0.0
    %156 = vmatprep.subr.mxu0 0.0
    %157 = vmatpush2.msra.mxu0 0.0
    %158 = vmatprep.subr.mxu0 0.0
    %159 = vmatpush2.msra.mxu0 0.0
    %160 = vmatprep.subr.mxu0 0.0
    %161 = vmatpush2.msra.mxu0 0.0
    %162 = vmatprep.subr.mxu0 0.0
    %163 = vmatpush2.msra.mxu0 0.0
    %164 = vmatprep.subr.mxu0 0.0
    %165 = vmatpush2.msra.mxu0 0.0
    %166 = vmatprep.subr.mxu0 0.0
    %167 = vmatpush2.msra.mxu0 0.0
    %168 = vmatprep.subr.mxu0 0.0
    %169 = vmatpush2.msra.mxu0 0.0
    %170 = vmatprep.mubr.f32.mxu0 0.0
    %171 = vmatmul.mubr.f32.gmra.mxu0 %v83
    %v172 = vpop.f32.mrf.mxu0
    %v173 = vadd.f32 %v79, %v172
    %v174 = vpop.f32.mrf.mxu0
    %175 = vmatprep.mubr.f32.mxu0 0.0
    %176 = vmatmul.mubr.f32.gmra.mxu0 %v86
    %v177 = vpop.f32.mrf.mxu0
    %v178 = vadd.f32 %v79, %v177
    %v179 = vpop.f32.mrf.mxu0
    %180 = vmatprep.mubr.f32.mxu0 0.0
    %181 = vmatmul.mubr.f32.gmra.mxu0 %v89
    %v182 = vpop.f32.mrf.mxu0
    %v183 = vadd.f32 %v79, %v182
    %v184 = vpop.f32.mrf.mxu0
    %185 = vmatprep.mubr.f32.mxu0 0.0
    %186 = vmatmul.mubr.f32.gmra.mxu0 %v92
    %v187 = vpop.f32.mrf.mxu0
    %v188 = vadd.f32 %v79, %v187
    %v189 = vpop.f32.mrf.mxu0
    %190 = vmatprep.mubr.f32.mxu0 0.0
    %191 = vmatmul.mubr.f32.gmra.mxu0 %v95
    %v192 = vpop.f32.mrf.mxu0
    %v193 = vadd.f32 %v79, %v192
    %v194 = vpop.f32.mrf.mxu0
    %195 = vmatprep.mubr.f32.mxu0 0.0
    %196 = vmatmul.mubr.f32.gmra.mxu0 %v98
    %v197 = vpop.f32.mrf.mxu0
    %v198 = vadd.f32 %v79, %v197
    %v199 = vpop.f32.mrf.mxu0
    %200 = vmatprep.mubr.f32.mxu0 0.0
    %201 = vmatmul.mubr.f32.gmra.mxu0 %v101
    %v202 = vpop.f32.mrf.mxu0
    %v203 = vadd.f32 %v79, %v202
    %v204 = vpop.f32.mrf.mxu0
    %205 = vmatprep.mubr.f32.mxu0 0.0
    %206 = vmatmul.mubr.f32.gmra.mxu0 %v104
    %v207 = vpop.f32.mrf.mxu0
    %v208 = vadd.f32 %v79, %v207
    %v209 = vpop.f32.mrf.mxu0
    %210 = vdwg.mxu0
    %v211 = vld [vmem:[%s1] sm:$0xff]
    %s212 = scalar_lea.vmem %s1, 8
    %v213 = vld [vmem:[%s212] sm:$0xff]
    %vm214 = vcmask 261120
    %v216 = vsel %vm214, %v211, 0
    %218 = vmatprep.subr.mxu0 0.0
    %219 = vmatpush1.msra.mxu0 0.0
    %220 = vmatprep.subr.mxu0 0.0
    %221 = vmatpush1.msra.mxu0 0.0
    %222 = vmatprep.subr.mxu0 0.0
    %223 = vmatpush1.msra.mxu0 0.0
    %224 = vmatprep.subr.mxu0 0.0
    %225 = vmatpush1.msra.mxu0 0.0
    %226 = vmatprep.subr.mxu0 0.0
    %227 = vmatpush1.msra.mxu0 0.0
    %228 = vmatprep.subr.mxu0 0.0
    %229 = vmatpush1.msra.mxu0 0.0
    %230 = vmatprep.subr.mxu0 0.0
    %231 = vmatpush1.msra.mxu0 0.0
    %232 = vmatprep.subr.mxu0 0.0
    %233 = vmatpush1.msra.mxu0 0.0
    %234 = vmatprep.subr.mxu0 0.0
    %235 = vmatpush1.msra.mxu0 0.0
    %236 = vmatprep.subr.mxu0 0.0
    %237 = vmatpush1.msra.mxu0 0.0
    %238 = vmatprep.subr.mxu0 0.0
    %239 = vmatpush1.msra.mxu0 0.0
    %240 = vmatprep.subr.mxu0 0.0
    %241 = vmatpush1.msra.mxu0 0.0
    %242 = vmatprep.subr.mxu0 0.0
    %243 = vmatpush1.msra.mxu0 %v60
    %244 = vmatprep.subr.mxu0 0.0
    %245 = vmatpush1.msra.mxu0 %v59
    %246 = vmatprep.subr.mxu0 0.0
    %247 = vmatpush1.msra.mxu0 %v58
    %248 = vmatprep.subr.mxu0 0.0
    %249 = vmatpush1.msra.mxu0 %v57
    %250 = vmatprep.subr.mxu0 0.0
    %251 = vmatpush2.msra.mxu0 0.0
    %252 = vmatprep.subr.mxu0 0.0
    %253 = vmatpush2.msra.mxu0 0.0
    %254 = vmatprep.subr.mxu0 0.0
    %255 = vmatpush2.msra.mxu0 0.0
    %256 = vmatprep.subr.mxu0 0.0
    %257 = vmatpush2.msra.mxu0 0.0
    %258 = vmatprep.subr.mxu0 0.0
    %259 = vmatpush2.msra.mxu0 0.0
    %260 = vmatprep.subr.mxu0 0.0
    %261 = vmatpush2.msra.mxu0 0.0
    %262 = vmatprep.subr.mxu0 0.0
    %263 = vmatpush2.msra.mxu0 0.0
    %264 = vmatprep.subr.mxu0 0.0
    %265 = vmatpush2.msra.mxu0 0.0
    %266 = vmatprep.subr.mxu0 0.0
    %267 = vmatpush2.msra.mxu0 0.0
    %268 = vmatprep.subr.mxu0 0.0
    %269 = vmatpush2.msra.mxu0 0.0
    %270 = vmatprep.subr.mxu0 0.0
    %271 = vmatpush2.msra.mxu0 0.0
    %272 = vmatprep.subr.mxu0 0.0
    %273 = vmatpush2.msra.mxu0 0.0
    %274 = vmatprep.subr.mxu0 0.0
    %275 = vmatpush2.msra.mxu0 0.0
    %276 = vmatprep.subr.mxu0 0.0
    %277 = vmatpush2.msra.mxu0 0.0
    %278 = vmatprep.subr.mxu0 0.0
    %279 = vmatpush2.msra.mxu0 0.0
    %280 = vmatprep.subr.mxu0 0.0
    %281 = vmatpush2.msra.mxu0 0.0
    %282 = vmatprep.mubr.f32.mxu0 0.0
    %283 = vmatmul.mubr.f32.gmra.mxu0 %v216
    %v284 = vpop.f32.mrf.mxu0
    %v285 = vadd.f32 0.0, %v284
    %v286 = vpop.f32.mrf.mxu0
    %287 = vdwg.mxu0
    %v288 = vadd.f32 %v173, %v285
    %v289 = vtanh.pop %v288
    %v291 = vsel %vm214, %v213, 0
    %293 = vmatprep.subr.mxu0 0.0
    %294 = vmatpush1.msra.mxu0 0.0
    %295 = vmatprep.subr.mxu0 0.0
    %296 = vmatpush1.msra.mxu0 0.0
    %297 = vmatprep.subr.mxu0 0.0
    %298 = vmatpush1.msra.mxu0 0.0
    %299 = vmatprep.subr.mxu0 0.0
    %300 = vmatpush1.msra.mxu0 0.0
    %301 = vmatprep.subr.mxu0 0.0
    %302 = vmatpush1.msra.mxu0 0.0
    %303 = vmatprep.subr.mxu0 0.0
    %304 = vmatpush1.msra.mxu0 0.0
    %305 = vmatprep.subr.mxu0 0.0
    %306 = vmatpush1.msra.mxu0 0.0
    %307 = vmatprep.subr.mxu0 0.0
    %308 = vmatpush1.msra.mxu0 0.0
    %309 = vmatprep.subr.mxu0 0.0
    %310 = vmatpush1.msra.mxu0 0.0
    %311 = vmatprep.subr.mxu0 0.0
    %312 = vmatpush1.msra.mxu0 0.0
    %313 = vmatprep.subr.mxu0 0.0
    %314 = vmatpush1.msra.mxu0 0.0
    %315 = vmatprep.subr.mxu0 0.0
    %316 = vmatpush1.msra.mxu0 0.0
    %317 = vmatprep.subr.mxu0 0.0
    %318 = vmatpush1.msra.mxu0 %v64
    %319 = vmatprep.subr.mxu0 0.0
    %320 = vmatpush1.msra.mxu0 %v63
    %321 = vmatprep.subr.mxu0 0.0
    %322 = vmatpush1.msra.mxu0 %v62
    %323 = vmatprep.subr.mxu0 0.0
    %324 = vmatpush1.msra.mxu0 %v61
    %325 = vmatprep.subr.mxu0 0.0
    %326 = vmatpush2.msra.mxu0 0.0
    %327 = vmatprep.subr.mxu0 0.0
    %328 = vmatpush2.msra.mxu0 0.0
    %329 = vmatprep.subr.mxu0 0.0
    %330 = vmatpush2.msra.mxu0 0.0
    %331 = vmatprep.subr.mxu0 0.0
    %332 = vmatpush2.msra.mxu0 0.0
    %333 = vmatprep.subr.mxu0 0.0
    %334 = vmatpush2.msra.mxu0 0.0
    %335 = vmatprep.subr.mxu0 0.0
    %336 = vmatpush2.msra.mxu0 0.0
    %337 = vmatprep.subr.mxu0 0.0
    %338 = vmatpush2.msra.mxu0 0.0
    %339 = vmatprep.subr.mxu0 0.0
    %340 = vmatpush2.msra.mxu0 0.0
    %341 = vmatprep.subr.mxu0 0.0
    %342 = vmatpush2.msra.mxu0 0.0
    %343 = vmatprep.subr.mxu0 0.0
    %344 = vmatpush2.msra.mxu0 0.0
    %345 = vmatprep.subr.mxu0 0.0
    %346 = vmatpush2.msra.mxu0 0.0
    %347 = vmatprep.subr.mxu0 0.0
    %348 = vmatpush2.msra.mxu0 0.0
    %349 = vmatprep.subr.mxu0 0.0
    %350 = vmatpush2.msra.mxu0 0.0
    %351 = vmatprep.subr.mxu0 0.0
    %352 = vmatpush2.msra.mxu0 0.0
    %353 = vmatprep.subr.mxu0 0.0
    %354 = vmatpush2.msra.mxu0 0.0
    %355 = vmatprep.subr.mxu0 0.0
    %356 = vmatpush2.msra.mxu0 0.0
    %357 = vmatprep.mubr.f32.mxu0 0.0
    %358 = vmatmul.mubr.f32.gmra.mxu0 %v291
    %v359 = vpop.f32.mrf.mxu0
    %v360 = vadd.f32 0.0, %v359
    %v361 = vpop.f32.mrf.mxu0
    %362 = vdwg.mxu0
    %v364 = vsel %vm214, %v289, 0
    %366 = vmatprep.subr.mxu0 0.0
    %367 = vmatpush1.msra.mxu0 0.0
    %368 = vmatprep.subr.mxu0 0.0
    %369 = vmatpush1.msra.mxu0 0.0
    %370 = vmatprep.subr.mxu0 0.0
    %371 = vmatpush1.msra.mxu0 0.0
    %372 = vmatprep.subr.mxu0 0.0
    %373 = vmatpush1.msra.mxu0 0.0
    %374 = vmatprep.subr.mxu0 0.0
    %375 = vmatpush1.msra.mxu0 0.0
    %376 = vmatprep.subr.mxu0 0.0
    %377 = vmatpush1.msra.mxu0 0.0
    %378 = vmatprep.subr.mxu0 0.0
    %379 = vmatpush1.msra.mxu0 0.0
    %380 = vmatprep.subr.mxu0 0.0
    %381 = vmatpush1.msra.mxu0 0.0
    %382 = vmatprep.subr.mxu0 0.0
    %383 = vmatpush1.msra.mxu0 0.0
    %384 = vmatprep.subr.mxu0 0.0
    %385 = vmatpush1.msra.mxu0 0.0
    %386 = vmatprep.subr.mxu0 0.0
    %387 = vmatpush1.msra.mxu0 0.0
    %388 = vmatprep.subr.mxu0 0.0
    %389 = vmatpush1.msra.mxu0 0.0
    %390 = vmatprep.subr.mxu0 0.0
    %391 = vmatpush1.msra.mxu0 %v56
    %392 = vmatprep.subr.mxu0 0.0
    %393 = vmatpush1.msra.mxu0 %v55
    %394 = vmatprep.subr.mxu0 0.0
    %395 = vmatpush1.msra.mxu0 %v54
    %396 = vmatprep.subr.mxu0 0.0
    %397 = vmatpush1.msra.mxu0 %v53
    %398 = vmatprep.subr.mxu0 0.0
    %399 = vmatpush2.msra.mxu0 0.0
    %400 = vmatprep.subr.mxu0 0.0
    %401 = vmatpush2.msra.mxu0 0.0
    %402 = vmatprep.subr.mxu0 0.0
    %403 = vmatpush2.msra.mxu0 0.0
    %404 = vmatprep.subr.mxu0 0.0
    %405 = vmatpush2.msra.mxu0 0.0
    %406 = vmatprep.subr.mxu0 0.0
    %407 = vmatpush2.msra.mxu0 0.0
    %408 = vmatprep.subr.mxu0 0.0
    %409 = vmatpush2.msra.mxu0 0.0
    %410 = vmatprep.subr.mxu0 0.0
    %411 = vmatpush2.msra.mxu0 0.0
    %412 = vmatprep.subr.mxu0 0.0
    %413 = vmatpush2.msra.mxu0 0.0
    %414 = vmatprep.subr.mxu0 0.0
    %415 = vmatpush2.msra.mxu0 0.0
    %416 = vmatprep.subr.mxu0 0.0
    %417 = vmatpush2.msra.mxu0 0.0
    %418 = vmatprep.subr.mxu0 0.0
    %419 = vmatpush2.msra.mxu0 0.0
    %420 = vmatprep.subr.mxu0 0.0
    %421 = vmatpush2.msra.mxu0 0.0
    %422 = vmatprep.subr.mxu0 0.0
    %423 = vmatpush2.msra.mxu0 0.0
    %424 = vmatprep.subr.mxu0 0.0
    %425 = vmatpush2.msra.mxu0 0.0
    %426 = vmatprep.subr.mxu0 0.0
    %427 = vmatpush2.msra.mxu0 0.0
    %428 = vmatprep.subr.mxu0 0.0
    %429 = vmatpush2.msra.mxu0 0.0
    %430 = vmatprep.mubr.f32.mxu0 0.0
    %431 = vmatmul.mubr.f32.gmra.mxu0 %v364
    %v432 = vpop.f32.mrf.mxu0
    %v433 = vadd.f32 %v360, %v432
    %v434 = vpop.f32.mrf.mxu0
    %435 = vdwg.mxu0
    %v437 = vlaneseq
    %v438 = vshrl.u32 %v437, 7
    %v439 = vsub.s32 0, %v438
    %v440 = vrot.slane %v66, %v439
    %v442 = vadd.f32 %v433, %v440
    %v443 = vtanh.pop %v442
    %444 = vmatprep.subr.mxu0 0.0
    %445 = vmatpush1.msra.mxu0 0.0
    %446 = vmatprep.subr.mxu0 0.0
    %447 = vmatpush1.msra.mxu0 0.0
    %448 = vmatprep.subr.mxu0 0.0
    %449 = vmatpush1.msra.mxu0 0.0
    %450 = vmatprep.subr.mxu0 0.0
    %451 = vmatpush1.msra.mxu0 0.0
    %452 = vmatprep.subr.mxu0 0.0
    %453 = vmatpush1.msra.mxu0 0.0
    %454 = vmatprep.subr.mxu0 0.0
    %455 = vmatpush1.msra.mxu0 0.0
    %456 = vmatprep.subr.mxu0 0.0
    %457 = vmatpush1.msra.mxu0 0.0
    %458 = vmatprep.subr.mxu0 0.0
    %459 = vmatpush1.msra.mxu0 0.0
    %460 = vmatprep.subr.mxu0 0.0
    %461 = vmatpush1.msra.mxu0 0.0
    %462 = vmatprep.subr.mxu0 0.0
    %463 = vmatpush1.msra.mxu0 0.0
    %464 = vmatprep.subr.mxu0 0.0
    %465 = vmatpush1.msra.mxu0 0.0
    %466 = vmatprep.subr.mxu0 0.0
    %467 = vmatpush1.msra.mxu0 0.0
    %468 = vmatprep.subr.mxu0 0.0
    %469 = vmatpush1.msra.mxu0 %v60
    %470 = vmatprep.subr.mxu0 0.0
    %471 = vmatpush1.msra.mxu0 %v59
    %472 = vmatprep.subr.mxu0 0.0
    %473 = vmatpush1.msra.mxu0 %v58
    %474 = vmatprep.subr.mxu0 0.0
    %475 = vmatpush1.msra.mxu0 %v57
    %476 = vmatprep.subr.mxu0 0.0
    %477 = vmatpush2.msra.mxu0 0.0
    %478 = vmatprep.subr.mxu0 0.0
    %479 = vmatpush2.msra.mxu0 0.0
    %480 = vmatprep.subr.mxu0 0.0
    %481 = vmatpush2.msra.mxu0 0.0
    %482 = vmatprep.subr.mxu0 0.0
    %483 = vmatpush2.msra.mxu0 0.0
    %484 = vmatprep.subr.mxu0 0.0
    %485 = vmatpush2.msra.mxu0 0.0
    %486 = vmatprep.subr.mxu0 0.0
    %487 = vmatpush2.msra.mxu0 0.0
    %488 = vmatprep.subr.mxu0 0.0
    %489 = vmatpush2.msra.mxu0 0.0
    %490 = vmatprep.subr.mxu0 0.0
    %491 = vmatpush2.msra.mxu0 0.0
    %492 = vmatprep.subr.mxu0 0.0
    %493 = vmatpush2.msra.mxu0 0.0
    %494 = vmatprep.subr.mxu0 0.0
    %495 = vmatpush2.msra.mxu0 0.0
    %496 = vmatprep.subr.mxu0 0.0
    %497 = vmatpush2.msra.mxu0 0.0
    %498 = vmatprep.subr.mxu0 0.0
    %499 = vmatpush2.msra.mxu0 0.0
    %500 = vmatprep.subr.mxu0 0.0
    %501 = vmatpush2.msra.mxu0 0.0
    %502 = vmatprep.subr.mxu0 0.0
    %503 = vmatpush2.msra.mxu0 0.0
    %504 = vmatprep.subr.mxu0 0.0
    %505 = vmatpush2.msra.mxu0 0.0
    %506 = vmatprep.subr.mxu0 0.0
    %507 = vmatpush2.msra.mxu0 0.0
    %508 = vmatprep.mubr.f32.mxu0 0.0
    %509 = vmatmul.mubr.f32.gmra.mxu0 %v364
    %v510 = vpop.f32.mrf.mxu0
    %v511 = vadd.f32 0.0, %v510
    %v512 = vpop.f32.mrf.mxu0
    %513 = vdwg.mxu0
    %v514 = vadd.f32 %v178, %v511
    %v515 = vtanh.pop %v514
    %v517 = vsel %vm214, %v443, 0
    %519 = vmatprep.subr.mxu0 0.0
    %520 = vmatpush1.msra.mxu0 0.0
    %521 = vmatprep.subr.mxu0 0.0
    %522 = vmatpush1.msra.mxu0 0.0
    %523 = vmatprep.subr.mxu0 0.0
    %524 = vmatpush1.msra.mxu0 0.0
    %525 = vmatprep.subr.mxu0 0.0
    %526 = vmatpush1.msra.mxu0 0.0
    %527 = vmatprep.subr.mxu0 0.0
    %528 = vmatpush1.msra.mxu0 0.0
    %529 = vmatprep.subr.mxu0 0.0
    %530 = vmatpush1.msra.mxu0 0.0
    %531 = vmatprep.subr.mxu0 0.0
    %532 = vmatpush1.msra.mxu0 0.0
    %533 = vmatprep.subr.mxu0 0.0
    %534 = vmatpush1.msra.mxu0 0.0
    %535 = vmatprep.subr.mxu0 0.0
    %536 = vmatpush1.msra.mxu0 0.0
    %537 = vmatprep.subr.mxu0 0.0
    %538 = vmatpush1.msra.mxu0 0.0
    %539 = vmatprep.subr.mxu0 0.0
    %540 = vmatpush1.msra.mxu0 0.0
    %541 = vmatprep.subr.mxu0 0.0
    %542 = vmatpush1.msra.mxu0 0.0
    %543 = vmatprep.subr.mxu0 0.0
    %544 = vmatpush1.msra.mxu0 %v64
    %545 = vmatprep.subr.mxu0 0.0
    %546 = vmatpush1.msra.mxu0 %v63
    %547 = vmatprep.subr.mxu0 0.0
    %548 = vmatpush1.msra.mxu0 %v62
    %549 = vmatprep.subr.mxu0 0.0
    %550 = vmatpush1.msra.mxu0 %v61
    %551 = vmatprep.subr.mxu0 0.0
    %552 = vmatpush2.msra.mxu0 0.0
    %553 = vmatprep.subr.mxu0 0.0
    %554 = vmatpush2.msra.mxu0 0.0
    %555 = vmatprep.subr.mxu0 0.0
    %556 = vmatpush2.msra.mxu0 0.0
    %557 = vmatprep.subr.mxu0 0.0
    %558 = vmatpush2.msra.mxu0 0.0
    %559 = vmatprep.subr.mxu0 0.0
    %560 = vmatpush2.msra.mxu0 0.0
    %561 = vmatprep.subr.mxu0 0.0
    %562 = vmatpush2.msra.mxu0 0.0
    %563 = vmatprep.subr.mxu0 0.0
    %564 = vmatpush2.msra.mxu0 0.0
    %565 = vmatprep.subr.mxu0 0.0
    %566 = vmatpush2.msra.mxu0 0.0
    %567 = vmatprep.subr.mxu0 0.0
    %568 = vmatpush2.msra.mxu0 0.0
    %569 = vmatprep.subr.mxu0 0.0
    %570 = vmatpush2.msra.mxu0 0.0
    %571 = vmatprep.subr.mxu0 0.0
    %572 = vmatpush2.msra.mxu0 0.0
    %573 = vmatprep.subr.mxu0 0.0
    %574 = vmatpush2.msra.mxu0 0.0
    %575 = vmatprep.subr.mxu0 0.0
    %576 = vmatpush2.msra.mxu0 0.0
    %577 = vmatprep.subr.mxu0 0.0
    %578 = vmatpush2.msra.mxu0 0.0
    %579 = vmatprep.subr.mxu0 0.0
    %580 = vmatpush2.msra.mxu0 0.0
    %581 = vmatprep.subr.mxu0 0.0
    %582 = vmatpush2.msra.mxu0 0.0
    %583 = vmatprep.mubr.f32.mxu0 0.0
    %584 = vmatmul.mubr.f32.gmra.mxu0 %v517
    %v585 = vpop.f32.mrf.mxu0
    %v586 = vadd.f32 0.0, %v585
    %v587 = vpop.f32.mrf.mxu0
    %588 = vdwg.mxu0
    %v590 = vsel %vm214, %v515, 0
    %592 = vmatprep.subr.mxu0 0.0
    %593 = vmatpush1.msra.mxu0 0.0
    %594 = vmatprep.subr.mxu0 0.0
    %595 = vmatpush1.msra.mxu0 0.0
    %596 = vmatprep.subr.mxu0 0.0
    %597 = vmatpush1.msra.mxu0 0.0
    %598 = vmatprep.subr.mxu0 0.0
    %599 = vmatpush1.msra.mxu0 0.0
    %600 = vmatprep.subr.mxu0 0.0
    %601 = vmatpush1.msra.mxu0 0.0
    %602 = vmatprep.subr.mxu0 0.0
    %603 = vmatpush1.msra.mxu0 0.0
    %604 = vmatprep.subr.mxu0 0.0
    %605 = vmatpush1.msra.mxu0 0.0
    %606 = vmatprep.subr.mxu0 0.0
    %607 = vmatpush1.msra.mxu0 0.0
    %608 = vmatprep.subr.mxu0 0.0
    %609 = vmatpush1.msra.mxu0 0.0
    %610 = vmatprep.subr.mxu0 0.0
    %611 = vmatpush1.msra.mxu0 0.0
    %612 = vmatprep.subr.mxu0 0.0
    %613 = vmatpush1.msra.mxu0 0.0
    %614 = vmatprep.subr.mxu0 0.0
    %615 = vmatpush1.msra.mxu0 0.0
    %616 = vmatprep.subr.mxu0 0.0
    %617 = vmatpush1.msra.mxu0 %v56
    %618 = vmatprep.subr.mxu0 0.0
    %619 = vmatpush1.msra.mxu0 %v55
    %620 = vmatprep.subr.mxu0 0.0
    %621 = vmatpush1.msra.mxu0 %v54
    %622 = vmatprep.subr.mxu0 0.0
    %623 = vmatpush1.msra.mxu0 %v53
    %624 = vmatprep.subr.mxu0 0.0
    %625 = vmatpush2.msra.mxu0 0.0
    %626 = vmatprep.subr.mxu0 0.0
    %627 = vmatpush2.msra.mxu0 0.0
    %628 = vmatprep.subr.mxu0 0.0
    %629 = vmatpush2.msra.mxu0 0.0
    %630 = vmatprep.subr.mxu0 0.0
    %631 = vmatpush2.msra.mxu0 0.0
    %632 = vmatprep.subr.mxu0 0.0
    %633 = vmatpush2.msra.mxu0 0.0
    %634 = vmatprep.subr.mxu0 0.0
    %635 = vmatpush2.msra.mxu0 0.0
    %636 = vmatprep.subr.mxu0 0.0
    %637 = vmatpush2.msra.mxu0 0.0
    %638 = vmatprep.subr.mxu0 0.0
    %639 = vmatpush2.msra.mxu0 0.0
    %640 = vmatprep.subr.mxu0 0.0
    %641 = vmatpush2.msra.mxu0 0.0
    %642 = vmatprep.subr.mxu0 0.0
    %643 = vmatpush2.msra.mxu0 0.0
    %644 = vmatprep.subr.mxu0 0.0
    %645 = vmatpush2.msra.mxu0 0.0
    %646 = vmatprep.subr.mxu0 0.0
    %647 = vmatpush2.msra.mxu0 0.0
    %648 = vmatprep.subr.mxu0 0.0
    %649 = vmatpush2.msra.mxu0 0.0
    %650 = vmatprep.subr.mxu0 0.0
    %651 = vmatpush2.msra.mxu0 0.0
    %652 = vmatprep.subr.mxu0 0.0
    %653 = vmatpush2.msra.mxu0 0.0
    %654 = vmatprep.subr.mxu0 0.0
    %655 = vmatpush2.msra.mxu0 0.0
    %656 = vmatprep.mubr.f32.mxu0 0.0
    %657 = vmatmul.mubr.f32.gmra.mxu0 %v590
    %v658 = vpop.f32.mrf.mxu0
    %v659 = vadd.f32 %v586, %v658
    %v660 = vpop.f32.mrf.mxu0
    %661 = vdwg.mxu0
    %v662 = vadd.f32 %v659, %v440
    %v663 = vtanh.pop %v662
    %664 = vmatprep.subr.mxu0 0.0
    %665 = vmatpush1.msra.mxu0 0.0
    %666 = vmatprep.subr.mxu0 0.0
    %667 = vmatpush1.msra.mxu0 0.0
    %668 = vmatprep.subr.mxu0 0.0
    %669 = vmatpush1.msra.mxu0 0.0
    %670 = vmatprep.subr.mxu0 0.0
    %671 = vmatpush1.msra.mxu0 0.0
    %672 = vmatprep.subr.mxu0 0.0
    %673 = vmatpush1.msra.mxu0 0.0
    %674 = vmatprep.subr.mxu0 0.0
    %675 = vmatpush1.msra.mxu0 0.0
    %676 = vmatprep.subr.mxu0 0.0
    %677 = vmatpush1.msra.mxu0 0.0
    %678 = vmatprep.subr.mxu0 0.0
    %679 = vmatpush1.msra.mxu0 0.0
    %680 = vmatprep.subr.mxu0 0.0
    %681 = vmatpush1.msra.mxu0 0.0
    %682 = vmatprep.subr.mxu0 0.0
    %683 = vmatpush1.msra.mxu0 0.0
    %684 = vmatprep.subr.mxu0 0.0
    %685 = vmatpush1.msra.mxu0 0.0
    %686 = vmatprep.subr.mxu0 0.0
    %687 = vmatpush1.msra.mxu0 0.0
    %688 = vmatprep.subr.mxu0 0.0
    %689 = vmatpush1.msra.mxu0 %v60
    %690 = vmatprep.subr.mxu0 0.0
    %691 = vmatpush1.msra.mxu0 %v59
    %692 = vmatprep.subr.mxu0 0.0
    %693 = vmatpush1.msra.mxu0 %v58
    %694 = vmatprep.subr.mxu0 0.0
    %695 = vmatpush1.msra.mxu0 %v57
    %696 = vmatprep.subr.mxu0 0.0
    %697 = vmatpush2.msra.mxu0 0.0
    %698 = vmatprep.subr.mxu0 0.0
    %699 = vmatpush2.msra.mxu0 0.0
    %700 = vmatprep.subr.mxu0 0.0
    %701 = vmatpush2.msra.mxu0 0.0
    %702 = vmatprep.subr.mxu0 0.0
    %703 = vmatpush2.msra.mxu0 0.0
    %704 = vmatprep.subr.mxu0 0.0
    %705 = vmatpush2.msra.mxu0 0.0
    %706 = vmatprep.subr.mxu0 0.0
    %707 = vmatpush2.msra.mxu0 0.0
    %708 = vmatprep.subr.mxu0 0.0
    %709 = vmatpush2.msra.mxu0 0.0
    %710 = vmatprep.subr.mxu0 0.0
    %711 = vmatpush2.msra.mxu0 0.0
    %712 = vmatprep.subr.mxu0 0.0
    %713 = vmatpush2.msra.mxu0 0.0
    %714 = vmatprep.subr.mxu0 0.0
    %715 = vmatpush2.msra.mxu0 0.0
    %716 = vmatprep.subr.mxu0 0.0
    %717 = vmatpush2.msra.mxu0 0.0
    %718 = vmatprep.subr.mxu0 0.0
    %719 = vmatpush2.msra.mxu0 0.0
    %720 = vmatprep.subr.mxu0 0.0
    %721 = vmatpush2.msra.mxu0 0.0
    %722 = vmatprep.subr.mxu0 0.0
    %723 = vmatpush2.msra.mxu0 0.0
    %724 = vmatprep.subr.mxu0 0.0
    %725 = vmatpush2.msra.mxu0 0.0
    %726 = vmatprep.subr.mxu0 0.0
    %727 = vmatpush2.msra.mxu0 0.0
    %728 = vmatprep.mubr.f32.mxu0 0.0
    %729 = vmatmul.mubr.f32.gmra.mxu0 %v590
    %v730 = vpop.f32.mrf.mxu0
    %v731 = vadd.f32 0.0, %v730
    %v732 = vpop.f32.mrf.mxu0
    %733 = vdwg.mxu0
    %v734 = vadd.f32 %v183, %v731
    %v735 = vtanh.pop %v734
    %v737 = vsel %vm214, %v663, 0
    %739 = vmatprep.subr.mxu0 0.0
    %740 = vmatpush1.msra.mxu0 0.0
    %741 = vmatprep.subr.mxu0 0.0
    %742 = vmatpush1.msra.mxu0 0.0
    %743 = vmatprep.subr.mxu0 0.0
    %744 = vmatpush1.msra.mxu0 0.0
    %745 = vmatprep.subr.mxu0 0.0
    %746 = vmatpush1.msra.mxu0 0.0
    %747 = vmatprep.subr.mxu0 0.0
    %748 = vmatpush1.msra.mxu0 0.0
    %749 = vmatprep.subr.mxu0 0.0
    %750 = vmatpush1.msra.mxu0 0.0
    %751 = vmatprep.subr.mxu0 0.0
    %752 = vmatpush1.msra.mxu0 0.0
    %753 = vmatprep.subr.mxu0 0.0
    %754 = vmatpush1.msra.mxu0 0.0
    %755 = vmatprep.subr.mxu0 0.0
    %756 = vmatpush1.msra.mxu0 0.0
    %757 = vmatprep.subr.mxu0 0.0
    %758 = vmatpush1.msra.mxu0 0.0
    %759 = vmatprep.subr.mxu0 0.0
    %760 = vmatpush1.msra.mxu0 0.0
    %761 = vmatprep.subr.mxu0 0.0
    %762 = vmatpush1.msra.mxu0 0.0
    %763 = vmatprep.subr.mxu0 0.0
    %764 = vmatpush1.msra.mxu0 %v64
    %765 = vmatprep.subr.mxu0 0.0
    %766 = vmatpush1.msra.mxu0 %v63
    %767 = vmatprep.subr.mxu0 0.0
    %768 = vmatpush1.msra.mxu0 %v62
    %769 = vmatprep.subr.mxu0 0.0
    %770 = vmatpush1.msra.mxu0 %v61
    %771 = vmatprep.subr.mxu0 0.0
    %772 = vmatpush2.msra.mxu0 0.0
    %773 = vmatprep.subr.mxu0 0.0
    %774 = vmatpush2.msra.mxu0 0.0
    %775 = vmatprep.subr.mxu0 0.0
    %776 = vmatpush2.msra.mxu0 0.0
    %777 = vmatprep.subr.mxu0 0.0
    %778 = vmatpush2.msra.mxu0 0.0
    %779 = vmatprep.subr.mxu0 0.0
    %780 = vmatpush2.msra.mxu0 0.0
    %781 = vmatprep.subr.mxu0 0.0
    %782 = vmatpush2.msra.mxu0 0.0
    %783 = vmatprep.subr.mxu0 0.0
    %784 = vmatpush2.msra.mxu0 0.0
    %785 = vmatprep.subr.mxu0 0.0
    %786 = vmatpush2.msra.mxu0 0.0
    %787 = vmatprep.subr.mxu0 0.0
    %788 = vmatpush2.msra.mxu0 0.0
    %789 = vmatprep.subr.mxu0 0.0
    %790 = vmatpush2.msra.mxu0 0.0
    %791 = vmatprep.subr.mxu0 0.0
    %792 = vmatpush2.msra.mxu0 0.0
    %793 = vmatprep.subr.mxu0 0.0
    %794 = vmatpush2.msra.mxu0 0.0
    %795 = vmatprep.subr.mxu0 0.0
    %796 = vmatpush2.msra.mxu0 0.0
    %797 = vmatprep.subr.mxu0 0.0
    %798 = vmatpush2.msra.mxu0 0.0
    %799 = vmatprep.subr.mxu0 0.0
    %800 = vmatpush2.msra.mxu0 0.0
    %801 = vmatprep.subr.mxu0 0.0
    %802 = vmatpush2.msra.mxu0 0.0
    %803 = vmatprep.mubr.f32.mxu0 0.0
    %804 = vmatmul.mubr.f32.gmra.mxu0 %v737
    %v805 = vpop.f32.mrf.mxu0
    %v806 = vadd.f32 0.0, %v805
    %v807 = vpop.f32.mrf.mxu0
    %808 = vdwg.mxu0
    %v810 = vsel %vm214, %v735, 0
    %812 = vmatprep.subr.mxu0 0.0
    %813 = vmatpush1.msra.mxu0 0.0
    %814 = vmatprep.subr.mxu0 0.0
    %815 = vmatpush1.msra.mxu0 0.0
    %816 = vmatprep.subr.mxu0 0.0
    %817 = vmatpush1.msra.mxu0 0.0
    %818 = vmatprep.subr.mxu0 0.0
    %819 = vmatpush1.msra.mxu0 0.0
    %820 = vmatprep.subr.mxu0 0.0
    %821 = vmatpush1.msra.mxu0 0.0
    %822 = vmatprep.subr.mxu0 0.0
    %823 = vmatpush1.msra.mxu0 0.0
    %824 = vmatprep.subr.mxu0 0.0
    %825 = vmatpush1.msra.mxu0 0.0
    %826 = vmatprep.subr.mxu0 0.0
    %827 = vmatpush1.msra.mxu0 0.0
    %828 = vmatprep.subr.mxu0 0.0
    %829 = vmatpush1.msra.mxu0 0.0
    %830 = vmatprep.subr.mxu0 0.0
    %831 = vmatpush1.msra.mxu0 0.0
    %832 = vmatprep.subr.mxu0 0.0
    %833 = vmatpush1.msra.mxu0 0.0
    %834 = vmatprep.subr.mxu0 0.0
    %835 = vmatpush1.msra.mxu0 0.0
    %836 = vmatprep.subr.mxu0 0.0
    %837 = vmatpush1.msra.mxu0 %v56
    %838 = vmatprep.subr.mxu0 0.0
    %839 = vmatpush1.msra.mxu0 %v55
    %840 = vmatprep.subr.mxu0 0.0
    %841 = vmatpush1.msra.mxu0 %v54
    %842 = vmatprep.subr.mxu0 0.0
    %843 = vmatpush1.msra.mxu0 %v53
    %844 = vmatprep.subr.mxu0 0.0
    %845 = vmatpush2.msra.mxu0 0.0
    %846 = vmatprep.subr.mxu0 0.0
    %847 = vmatpush2.msra.mxu0 0.0
    %848 = vmatprep.subr.mxu0 0.0
    %849 = vmatpush2.msra.mxu0 0.0
    %850 = vmatprep.subr.mxu0 0.0
    %851 = vmatpush2.msra.mxu0 0.0
    %852 = vmatprep.subr.mxu0 0.0
    %853 = vmatpush2.msra.mxu0 0.0
    %854 = vmatprep.subr.mxu0 0.0
    %855 = vmatpush2.msra.mxu0 0.0
    %856 = vmatprep.subr.mxu0 0.0
    %857 = vmatpush2.msra.mxu0 0.0
    %858 = vmatprep.subr.mxu0 0.0
    %859 = vmatpush2.msra.mxu0 0.0
    %860 = vmatprep.subr.mxu0 0.0
    %861 = vmatpush2.msra.mxu0 0.0
    %862 = vmatprep.subr.mxu0 0.0
    %863 = vmatpush2.msra.mxu0 0.0
    %864 = vmatprep.subr.mxu0 0.0
    %865 = vmatpush2.msra.mxu0 0.0
    %866 = vmatprep.subr.mxu0 0.0
    %867 = vmatpush2.msra.mxu0 0.0
    %868 = vmatprep.subr.mxu0 0.0
    %869 = vmatpush2.msra.mxu0 0.0
    %870 = vmatprep.subr.mxu0 0.0
    %871 = vmatpush2.msra.mxu0 0.0
    %872 = vmatprep.subr.mxu0 0.0
    %873 = vmatpush2.msra.mxu0 0.0
    %874 = vmatprep.subr.mxu0 0.0
    %875 = vmatpush2.msra.mxu0 0.0
    %876 = vmatprep.mubr.f32.mxu0 0.0
    %877 = vmatmul.mubr.f32.gmra.mxu0 %v810
    %v878 = vpop.f32.mrf.mxu0
    %v879 = vadd.f32 %v806, %v878
    %v880 = vpop.f32.mrf.mxu0
    %881 = vdwg.mxu0
    %v882 = vadd.f32 %v879, %v440
    %v883 = vtanh.pop %v882
    %884 = vmatprep.subr.mxu0 0.0
    %885 = vmatpush1.msra.mxu0 0.0
    %886 = vmatprep.subr.mxu0 0.0
    %887 = vmatpush1.msra.mxu0 0.0
    %888 = vmatprep.subr.mxu0 0.0
    %889 = vmatpush1.msra.mxu0 0.0
    %890 = vmatprep.subr.mxu0 0.0
    %891 = vmatpush1.msra.mxu0 0.0
    %892 = vmatprep.subr.mxu0 0.0
    %893 = vmatpush1.msra.mxu0 0.0
    %894 = vmatprep.subr.mxu0 0.0
    %895 = vmatpush1.msra.mxu0 0.0
    %896 = vmatprep.subr.mxu0 0.0
    %897 = vmatpush1.msra.mxu0 0.0
    %898 = vmatprep.subr.mxu0 0.0
    %899 = vmatpush1.msra.mxu0 0.0
    %900 = vmatprep.subr.mxu0 0.0
    %901 = vmatpush1.msra.mxu0 0.0
    %902 = vmatprep.subr.mxu0 0.0
    %903 = vmatpush1.msra.mxu0 0.0
    %904 = vmatprep.subr.mxu0 0.0
    %905 = vmatpush1.msra.mxu0 0.0
    %906 = vmatprep.subr.mxu0 0.0
    %907 = vmatpush1.msra.mxu0 0.0
    %908 = vmatprep.subr.mxu0 0.0
    %909 = vmatpush1.msra.mxu0 %v60
    %910 = vmatprep.subr.mxu0 0.0
    %911 = vmatpush1.msra.mxu0 %v59
    %912 = vmatprep.subr.mxu0 0.0
    %913 = vmatpush1.msra.mxu0 %v58
    %914 = vmatprep.subr.mxu0 0.0
    %915 = vmatpush1.msra.mxu0 %v57
    %916 = vmatprep.subr.mxu0 0.0
    %917 = vmatpush2.msra.mxu0 0.0
    %918 = vmatprep.subr.mxu0 0.0
    %919 = vmatpush2.msra.mxu0 0.0
    %920 = vmatprep.subr.mxu0 0.0
    %921 = vmatpush2.msra.mxu0 0.0
    %922 = vmatprep.subr.mxu0 0.0
    %923 = vmatpush2.msra.mxu0 0.0
    %924 = vmatprep.subr.mxu0 0.0
    %925 = vmatpush2.msra.mxu0 0.0
    %926 = vmatprep.subr.mxu0 0.0
    %927 = vmatpush2.msra.mxu0 0.0
    %928 = vmatprep.subr.mxu0 0.0
    %929 = vmatpush2.msra.mxu0 0.0
    %930 = vmatprep.subr.mxu0 0.0
    %931 = vmatpush2.msra.mxu0 0.0
    %932 = vmatprep.subr.mxu0 0.0
    %933 = vmatpush2.msra.mxu0 0.0
    %934 = vmatprep.subr.mxu0 0.0
    %935 = vmatpush2.msra.mxu0 0.0
    %936 = vmatprep.subr.mxu0 0.0
    %937 = vmatpush2.msra.mxu0 0.0
    %938 = vmatprep.subr.mxu0 0.0
    %939 = vmatpush2.msra.mxu0 0.0
    %940 = vmatprep.subr.mxu0 0.0
    %941 = vmatpush2.msra.mxu0 0.0
    %942 = vmatprep.subr.mxu0 0.0
    %943 = vmatpush2.msra.mxu0 0.0
    %944 = vmatprep.subr.mxu0 0.0
    %945 = vmatpush2.msra.mxu0 0.0
    %946 = vmatprep.subr.mxu0 0.0
    %947 = vmatpush2.msra.mxu0 0.0
    %948 = vmatprep.mubr.f32.mxu0 0.0
    %949 = vmatmul.mubr.f32.gmra.mxu0 %v810
    %v950 = vpop.f32.mrf.mxu0
    %v951 = vadd.f32 0.0, %v950
    %v952 = vpop.f32.mrf.mxu0
    %953 = vdwg.mxu0
    %v954 = vadd.f32 %v188, %v951
    %v955 = vtanh.pop %v954
    %v957 = vsel %vm214, %v883, 0
    %959 = vmatprep.subr.mxu0 0.0
    %960 = vmatpush1.msra.mxu0 0.0
    %961 = vmatprep.subr.mxu0 0.0
    %962 = vmatpush1.msra.mxu0 0.0
    %963 = vmatprep.subr.mxu0 0.0
    %964 = vmatpush1.msra.mxu0 0.0
    %965 = vmatprep.subr.mxu0 0.0
    %966 = vmatpush1.msra.mxu0 0.0
    %967 = vmatprep.subr.mxu0 0.0
    %968 = vmatpush1.msra.mxu0 0.0
    %969 = vmatprep.subr.mxu0 0.0
    %970 = vmatpush1.msra.mxu0 0.0
    %971 = vmatprep.subr.mxu0 0.0
    %972 = vmatpush1.msra.mxu0 0.0
    %973 = vmatprep.subr.mxu0 0.0
    %974 = vmatpush1.msra.mxu0 0.0
    %975 = vmatprep.subr.mxu0 0.0
    %976 = vmatpush1.msra.mxu0 0.0
    %977 = vmatprep.subr.mxu0 0.0
    %978 = vmatpush1.msra.mxu0 0.0
    %979 = vmatprep.subr.mxu0 0.0
    %980 = vmatpush1.msra.mxu0 0.0
    %981 = vmatprep.subr.mxu0 0.0
    %982 = vmatpush1.msra.mxu0 0.0
    %983 = vmatprep.subr.mxu0 0.0
    %984 = vmatpush1.msra.mxu0 %v64
    %985 = vmatprep.subr.mxu0 0.0
    %986 = vmatpush1.msra.mxu0 %v63
    %987 = vmatprep.subr.mxu0 0.0
    %988 = vmatpush1.msra.mxu0 %v62
    %989 = vmatprep.subr.mxu0 0.0
    %990 = vmatpush1.msra.mxu0 %v61
    %991 = vmatprep.subr.mxu0 0.0
    %992 = vmatpush2.msra.mxu0 0.0
    %993 = vmatprep.subr.mxu0 0.0
    %994 = vmatpush2.msra.mxu0 0.0
    %995 = vmatprep.subr.mxu0 0.0
    %996 = vmatpush2.msra.mxu0 0.0
    %997 = vmatprep.subr.mxu0 0.0
    %998 = vmatpush2.msra.mxu0 0.0
    %999 = vmatprep.subr.mxu0 0.0
    %1000 = vmatpush2.msra.mxu0 0.0
    %1001 = vmatprep.subr.mxu0 0.0
    %1002 = vmatpush2.msra.mxu0 0.0
    %1003 = vmatprep.subr.mxu0 0.0
    %1004 = vmatpush2.msra.mxu0 0.0
    %1005 = vmatprep.subr.mxu0 0.0
    %1006 = vmatpush2.msra.mxu0 0.0
    %1007 = vmatprep.subr.mxu0 0.0
    %1008 = vmatpush2.msra.mxu0 0.0
    %1009 = vmatprep.subr.mxu0 0.0
    %1010 = vmatpush2.msra.mxu0 0.0
    %1011 = vmatprep.subr.mxu0 0.0
    %1012 = vmatpush2.msra.mxu0 0.0
    %1013 = vmatprep.subr.mxu0 0.0
    %1014 = vmatpush2.msra.mxu0 0.0
    %1015 = vmatprep.subr.mxu0 0.0
    %1016 = vmatpush2.msra.mxu0 0.0
    %1017 = vmatprep.subr.mxu0 0.0
    %1018 = vmatpush2.msra.mxu0 0.0
    %1019 = vmatprep.subr.mxu0 0.0
    %1020 = vmatpush2.msra.mxu0 0.0
    %1021 = vmatprep.subr.mxu0 0.0
    %1022 = vmatpush2.msra.mxu0 0.0
    %1023 = vmatprep.mubr.f32.mxu0 0.0
    %1024 = vmatmul.mubr.f32.gmra.mxu0 %v957
    %v1025 = vpop.f32.mrf.mxu0
    %v1026 = vadd.f32 0.0, %v1025
    %v1027 = vpop.f32.mrf.mxu0
    %1028 = vdwg.mxu0
    %v1030 = vsel %vm214, %v955, 0
    %1032 = vmatprep.subr.mxu0 0.0
    %1033 = vmatpush1.msra.mxu0 0.0
    %1034 = vmatprep.subr.mxu0 0.0
    %1035 = vmatpush1.msra.mxu0 0.0
    %1036 = vmatprep.subr.mxu0 0.0
    %1037 = vmatpush1.msra.mxu0 0.0
    %1038 = vmatprep.subr.mxu0 0.0
    %1039 = vmatpush1.msra.mxu0 0.0
    %1040 = vmatprep.subr.mxu0 0.0
    %1041 = vmatpush1.msra.mxu0 0.0
    %1042 = vmatprep.subr.mxu0 0.0
    %1043 = vmatpush1.msra.mxu0 0.0
    %1044 = vmatprep.subr.mxu0 0.0
    %1045 = vmatpush1.msra.mxu0 0.0
    %1046 = vmatprep.subr.mxu0 0.0
    %1047 = vmatpush1.msra.mxu0 0.0
    %1048 = vmatprep.subr.mxu0 0.0
    %1049 = vmatpush1.msra.mxu0 0.0
    %1050 = vmatprep.subr.mxu0 0.0
    %1051 = vmatpush1.msra.mxu0 0.0
    %1052 = vmatprep.subr.mxu0 0.0
    %1053 = vmatpush1.msra.mxu0 0.0
    %1054 = vmatprep.subr.mxu0 0.0
    %1055 = vmatpush1.msra.mxu0 0.0
    %1056 = vmatprep.subr.mxu0 0.0
    %1057 = vmatpush1.msra.mxu0 %v56
    %1058 = vmatprep.subr.mxu0 0.0
    %1059 = vmatpush1.msra.mxu0 %v55
    %1060 = vmatprep.subr.mxu0 0.0
    %1061 = vmatpush1.msra.mxu0 %v54
    %1062 = vmatprep.subr.mxu0 0.0
    %1063 = vmatpush1.msra.mxu0 %v53
    %1064 = vmatprep.subr.mxu0 0.0
    %1065 = vmatpush2.msra.mxu0 0.0
    %1066 = vmatprep.subr.mxu0 0.0
    %1067 = vmatpush2.msra.mxu0 0.0
    %1068 = vmatprep.subr.mxu0 0.0
    %1069 = vmatpush2.msra.mxu0 0.0
    %1070 = vmatprep.subr.mxu0 0.0
    %1071 = vmatpush2.msra.mxu0 0.0
    %1072 = vmatprep.subr.mxu0 0.0
    %1073 = vmatpush2.msra.mxu0 0.0
    %1074 = vmatprep.subr.mxu0 0.0
    %1075 = vmatpush2.msra.mxu0 0.0
    %1076 = vmatprep.subr.mxu0 0.0
    %1077 = vmatpush2.msra.mxu0 0.0
    %1078 = vmatprep.subr.mxu0 0.0
    %1079 = vmatpush2.msra.mxu0 0.0
    %1080 = vmatprep.subr.mxu0 0.0
    %1081 = vmatpush2.msra.mxu0 0.0
    %1082 = vmatprep.subr.mxu0 0.0
    %1083 = vmatpush2.msra.mxu0 0.0
    %1084 = vmatprep.subr.mxu0 0.0
    %1085 = vmatpush2.msra.mxu0 0.0
    %1086 = vmatprep.subr.mxu0 0.0
    %1087 = vmatpush2.msra.mxu0 0.0
    %1088 = vmatprep.subr.mxu0 0.0
    %1089 = vmatpush2.msra.mxu0 0.0
    %1090 = vmatprep.subr.mxu0 0.0
    %1091 = vmatpush2.msra.mxu0 0.0
    %1092 = vmatprep.subr.mxu0 0.0
    %1093 = vmatpush2.msra.mxu0 0.0
    %1094 = vmatprep.subr.mxu0 0.0
    %1095 = vmatpush2.msra.mxu0 0.0
    %1096 = vmatprep.mubr.f32.mxu0 0.0
    %1097 = vmatmul.mubr.f32.gmra.mxu0 %v1030
    %v1098 = vpop.f32.mrf.mxu0
    %v1099 = vadd.f32 %v1026, %v1098
    %v1100 = vpop.f32.mrf.mxu0
    %1101 = vdwg.mxu0
    %v1102 = vadd.f32 %v1099, %v440
    %v1103 = vtanh.pop %v1102
    %1104 = vmatprep.subr.mxu0 0.0
    %1105 = vmatpush1.msra.mxu0 0.0
    %1106 = vmatprep.subr.mxu0 0.0
    %1107 = vmatpush1.msra.mxu0 0.0
    %1108 = vmatprep.subr.mxu0 0.0
    %1109 = vmatpush1.msra.mxu0 0.0
    %1110 = vmatprep.subr.mxu0 0.0
    %1111 = vmatpush1.msra.mxu0 0.0
    %1112 = vmatprep.subr.mxu0 0.0
    %1113 = vmatpush1.msra.mxu0 0.0
    %1114 = vmatprep.subr.mxu0 0.0
    %1115 = vmatpush1.msra.mxu0 0.0
    %1116 = vmatprep.subr.mxu0 0.0
    %1117 = vmatpush1.msra.mxu0 0.0
    %1118 = vmatprep.subr.mxu0 0.0
    %1119 = vmatpush1.msra.mxu0 0.0
    %1120 = vmatprep.subr.mxu0 0.0
    %1121 = vmatpush1.msra.mxu0 0.0
    %1122 = vmatprep.subr.mxu0 0.0
    %1123 = vmatpush1.msra.mxu0 0.0
    %1124 = vmatprep.subr.mxu0 0.0
    %1125 = vmatpush1.msra.mxu0 0.0
    %1126 = vmatprep.subr.mxu0 0.0
    %1127 = vmatpush1.msra.mxu0 0.0
    %1128 = vmatprep.subr.mxu0 0.0
    %1129 = vmatpush1.msra.mxu0 %v60
    %1130 = vmatprep.subr.mxu0 0.0
    %1131 = vmatpush1.msra.mxu0 %v59
    %1132 = vmatprep.subr.mxu0 0.0
    %1133 = vmatpush1.msra.mxu0 %v58
    %1134 = vmatprep.subr.mxu0 0.0
    %1135 = vmatpush1.msra.mxu0 %v57
    %1136 = vmatprep.subr.mxu0 0.0
    %1137 = vmatpush2.msra.mxu0 0.0
    %1138 = vmatprep.subr.mxu0 0.0
    %1139 = vmatpush2.msra.mxu0 0.0
    %1140 = vmatprep.subr.mxu0 0.0
    %1141 = vmatpush2.msra.mxu0 0.0
    %1142 = vmatprep.subr.mxu0 0.0
    %1143 = vmatpush2.msra.mxu0 0.0
    %1144 = vmatprep.subr.mxu0 0.0
    %1145 = vmatpush2.msra.mxu0 0.0
    %1146 = vmatprep.subr.mxu0 0.0
    %1147 = vmatpush2.msra.mxu0 0.0
    %1148 = vmatprep.subr.mxu0 0.0
    %1149 = vmatpush2.msra.mxu0 0.0
    %1150 = vmatprep.subr.mxu0 0.0
    %1151 = vmatpush2.msra.mxu0 0.0
    %1152 = vmatprep.subr.mxu0 0.0
    %1153 = vmatpush2.msra.mxu0 0.0
    %1154 = vmatprep.subr.mxu0 0.0
    %1155 = vmatpush2.msra.mxu0 0.0
    %1156 = vmatprep.subr.mxu0 0.0
    %1157 = vmatpush2.msra.mxu0 0.0
    %1158 = vmatprep.subr.mxu0 0.0
    %1159 = vmatpush2.msra.mxu0 0.0
    %1160 = vmatprep.subr.mxu0 0.0
    %1161 = vmatpush2.msra.mxu0 0.0
    %1162 = vmatprep.subr.mxu0 0.0
    %1163 = vmatpush2.msra.mxu0 0.0
    %1164 = vmatprep.subr.mxu0 0.0
    %1165 = vmatpush2.msra.mxu0 0.0
    %1166 = vmatprep.subr.mxu0 0.0
    %1167 = vmatpush2.msra.mxu0 0.0
    %1168 = vmatprep.mubr.f32.mxu0 0.0
    %1169 = vmatmul.mubr.f32.gmra.mxu0 %v1030
    %v1170 = vpop.f32.mrf.mxu0
    %v1171 = vadd.f32 0.0, %v1170
    %v1172 = vpop.f32.mrf.mxu0
    %1173 = vdwg.mxu0
    %v1174 = vadd.f32 %v193, %v1171
    %v1175 = vtanh.pop %v1174
    %v1177 = vsel %vm214, %v1103, 0
    %1179 = vmatprep.subr.mxu0 0.0
    %1180 = vmatpush1.msra.mxu0 0.0
    %1181 = vmatprep.subr.mxu0 0.0
    %1182 = vmatpush1.msra.mxu0 0.0
    %1183 = vmatprep.subr.mxu0 0.0
    %1184 = vmatpush1.msra.mxu0 0.0
    %1185 = vmatprep.subr.mxu0 0.0
    %1186 = vmatpush1.msra.mxu0 0.0
    %1187 = vmatprep.subr.mxu0 0.0
    %1188 = vmatpush1.msra.mxu0 0.0
    %1189 = vmatprep.subr.mxu0 0.0
    %1190 = vmatpush1.msra.mxu0 0.0
    %1191 = vmatprep.subr.mxu0 0.0
    %1192 = vmatpush1.msra.mxu0 0.0
    %1193 = vmatprep.subr.mxu0 0.0
    %1194 = vmatpush1.msra.mxu0 0.0
    %1195 = vmatprep.subr.mxu0 0.0
    %1196 = vmatpush1.msra.mxu0 0.0
    %1197 = vmatprep.subr.mxu0 0.0
    %1198 = vmatpush1.msra.mxu0 0.0
    %1199 = vmatprep.subr.mxu0 0.0
    %1200 = vmatpush1.msra.mxu0 0.0
    %1201 = vmatprep.subr.mxu0 0.0
    %1202 = vmatpush1.msra.mxu0 0.0
    %1203 = vmatprep.subr.mxu0 0.0
    %1204 = vmatpush1.msra.mxu0 %v64
    %1205 = vmatprep.subr.mxu0 0.0
    %1206 = vmatpush1.msra.mxu0 %v63
    %1207 = vmatprep.subr.mxu0 0.0
    %1208 = vmatpush1.msra.mxu0 %v62
    %1209 = vmatprep.subr.mxu0 0.0
    %1210 = vmatpush1.msra.mxu0 %v61
    %1211 = vmatprep.subr.mxu0 0.0
    %1212 = vmatpush2.msra.mxu0 0.0
    %1213 = vmatprep.subr.mxu0 0.0
    %1214 = vmatpush2.msra.mxu0 0.0
    %1215 = vmatprep.subr.mxu0 0.0
    %1216 = vmatpush2.msra.mxu0 0.0
    %1217 = vmatprep.subr.mxu0 0.0
    %1218 = vmatpush2.msra.mxu0 0.0
    %1219 = vmatprep.subr.mxu0 0.0
    %1220 = vmatpush2.msra.mxu0 0.0
    %1221 = vmatprep.subr.mxu0 0.0
    %1222 = vmatpush2.msra.mxu0 0.0
    %1223 = vmatprep.subr.mxu0 0.0
    %1224 = vmatpush2.msra.mxu0 0.0
    %1225 = vmatprep.subr.mxu0 0.0
    %1226 = vmatpush2.msra.mxu0 0.0
    %1227 = vmatprep.subr.mxu0 0.0
    %1228 = vmatpush2.msra.mxu0 0.0
    %1229 = vmatprep.subr.mxu0 0.0
    %1230 = vmatpush2.msra.mxu0 0.0
    %1231 = vmatprep.subr.mxu0 0.0
    %1232 = vmatpush2.msra.mxu0 0.0
    %1233 = vmatprep.subr.mxu0 0.0
    %1234 = vmatpush2.msra.mxu0 0.0
    %1235 = vmatprep.subr.mxu0 0.0
    %1236 = vmatpush2.msra.mxu0 0.0
    %1237 = vmatprep.subr.mxu0 0.0
    %1238 = vmatpush2.msra.mxu0 0.0
    %1239 = vmatprep.subr.mxu0 0.0
    %1240 = vmatpush2.msra.mxu0 0.0
    %1241 = vmatprep.subr.mxu0 0.0
    %1242 = vmatpush2.msra.mxu0 0.0
    %1243 = vmatprep.mubr.f32.mxu0 0.0
    %1244 = vmatmul.mubr.f32.gmra.mxu0 %v1177
    %v1245 = vpop.f32.mrf.mxu0
    %v1246 = vadd.f32 0.0, %v1245
    %v1247 = vpop.f32.mrf.mxu0
    %1248 = vdwg.mxu0
    %v1250 = vsel %vm214, %v1175, 0
    %1252 = vmatprep.subr.mxu0 0.0
    %1253 = vmatpush1.msra.mxu0 0.0
    %1254 = vmatprep.subr.mxu0 0.0
    %1255 = vmatpush1.msra.mxu0 0.0
    %1256 = vmatprep.subr.mxu0 0.0
    %1257 = vmatpush1.msra.mxu0 0.0
    %1258 = vmatprep.subr.mxu0 0.0
    %1259 = vmatpush1.msra.mxu0 0.0
    %1260 = vmatprep.subr.mxu0 0.0
    %1261 = vmatpush1.msra.mxu0 0.0
    %1262 = vmatprep.subr.mxu0 0.0
    %1263 = vmatpush1.msra.mxu0 0.0
    %1264 = vmatprep.subr.mxu0 0.0
    %1265 = vmatpush1.msra.mxu0 0.0
    %1266 = vmatprep.subr.mxu0 0.0
    %1267 = vmatpush1.msra.mxu0 0.0
    %1268 = vmatprep.subr.mxu0 0.0
    %1269 = vmatpush1.msra.mxu0 0.0
    %1270 = vmatprep.subr.mxu0 0.0
    %1271 = vmatpush1.msra.mxu0 0.0
    %1272 = vmatprep.subr.mxu0 0.0
    %1273 = vmatpush1.msra.mxu0 0.0
    %1274 = vmatprep.subr.mxu0 0.0
    %1275 = vmatpush1.msra.mxu0 0.0
    %1276 = vmatprep.subr.mxu0 0.0
    %1277 = vmatpush1.msra.mxu0 %v56
    %1278 = vmatprep.subr.mxu0 0.0
    %1279 = vmatpush1.msra.mxu0 %v55
    %1280 = vmatprep.subr.mxu0 0.0
    %1281 = vmatpush1.msra.mxu0 %v54
    %1282 = vmatprep.subr.mxu0 0.0
    %1283 = vmatpush1.msra.mxu0 %v53
    %1284 = vmatprep.subr.mxu0 0.0
    %1285 = vmatpush2.msra.mxu0 0.0
    %1286 = vmatprep.subr.mxu0 0.0
    %1287 = vmatpush2.msra.mxu0 0.0
    %1288 = vmatprep.subr.mxu0 0.0
    %1289 = vmatpush2.msra.mxu0 0.0
    %1290 = vmatprep.subr.mxu0 0.0
    %1291 = vmatpush2.msra.mxu0 0.0
    %1292 = vmatprep.subr.mxu0 0.0
    %1293 = vmatpush2.msra.mxu0 0.0
    %1294 = vmatprep.subr.mxu0 0.0
    %1295 = vmatpush2.msra.mxu0 0.0
    %1296 = vmatprep.subr.mxu0 0.0
    %1297 = vmatpush2.msra.mxu0 0.0
    %1298 = vmatprep.subr.mxu0 0.0
    %1299 = vmatpush2.msra.mxu0 0.0
    %1300 = vmatprep.subr.mxu0 0.0
    %1301 = vmatpush2.msra.mxu0 0.0
    %1302 = vmatprep.subr.mxu0 0.0
    %1303 = vmatpush2.msra.mxu0 0.0
    %1304 = vmatprep.subr.mxu0 0.0
    %1305 = vmatpush2.msra.mxu0 0.0
    %1306 = vmatprep.subr.mxu0 0.0
    %1307 = vmatpush2.msra.mxu0 0.0
    %1308 = vmatprep.subr.mxu0 0.0
    %1309 = vmatpush2.msra.mxu0 0.0
    %1310 = vmatprep.subr.mxu0 0.0
    %1311 = vmatpush2.msra.mxu0 0.0
    %1312 = vmatprep.subr.mxu0 0.0
    %1313 = vmatpush2.msra.mxu0 0.0
    %1314 = vmatprep.subr.mxu0 0.0
    %1315 = vmatpush2.msra.mxu0 0.0
    %1316 = vmatprep.mubr.f32.mxu0 0.0
    %1317 = vmatmul.mubr.f32.gmra.mxu0 %v1250
    %v1318 = vpop.f32.mrf.mxu0
    %v1319 = vadd.f32 %v1246, %v1318
    %v1320 = vpop.f32.mrf.mxu0
    %1321 = vdwg.mxu0
    %v1322 = vadd.f32 %v1319, %v440
    %v1323 = vtanh.pop %v1322
    %1324 = vmatprep.subr.mxu0 0.0
    %1325 = vmatpush1.msra.mxu0 0.0
    %1326 = vmatprep.subr.mxu0 0.0
    %1327 = vmatpush1.msra.mxu0 0.0
    %1328 = vmatprep.subr.mxu0 0.0
    %1329 = vmatpush1.msra.mxu0 0.0
    %1330 = vmatprep.subr.mxu0 0.0
    %1331 = vmatpush1.msra.mxu0 0.0
    %1332 = vmatprep.subr.mxu0 0.0
    %1333 = vmatpush1.msra.mxu0 0.0
    %1334 = vmatprep.subr.mxu0 0.0
    %1335 = vmatpush1.msra.mxu0 0.0
    %1336 = vmatprep.subr.mxu0 0.0
    %1337 = vmatpush1.msra.mxu0 0.0
    %1338 = vmatprep.subr.mxu0 0.0
    %1339 = vmatpush1.msra.mxu0 0.0
    %1340 = vmatprep.subr.mxu0 0.0
    %1341 = vmatpush1.msra.mxu0 0.0
    %1342 = vmatprep.subr.mxu0 0.0
    %1343 = vmatpush1.msra.mxu0 0.0
    %1344 = vmatprep.subr.mxu0 0.0
    %1345 = vmatpush1.msra.mxu0 0.0
    %1346 = vmatprep.subr.mxu0 0.0
    %1347 = vmatpush1.msra.mxu0 0.0
    %1348 = vmatprep.subr.mxu0 0.0
    %1349 = vmatpush1.msra.mxu0 %v60
    %1350 = vmatprep.subr.mxu0 0.0
    %1351 = vmatpush1.msra.mxu0 %v59
    %1352 = vmatprep.subr.mxu0 0.0
    %1353 = vmatpush1.msra.mxu0 %v58
    %1354 = vmatprep.subr.mxu0 0.0
    %1355 = vmatpush1.msra.mxu0 %v57
    %1356 = vmatprep.subr.mxu0 0.0
    %1357 = vmatpush2.msra.mxu0 0.0
    %1358 = vmatprep.subr.mxu0 0.0
    %1359 = vmatpush2.msra.mxu0 0.0
    %1360 = vmatprep.subr.mxu0 0.0
    %1361 = vmatpush2.msra.mxu0 0.0
    %1362 = vmatprep.subr.mxu0 0.0
    %1363 = vmatpush2.msra.mxu0 0.0
    %1364 = vmatprep.subr.mxu0 0.0
    %1365 = vmatpush2.msra.mxu0 0.0
    %1366 = vmatprep.subr.mxu0 0.0
    %1367 = vmatpush2.msra.mxu0 0.0
    %1368 = vmatprep.subr.mxu0 0.0
    %1369 = vmatpush2.msra.mxu0 0.0
    %1370 = vmatprep.subr.mxu0 0.0
    %1371 = vmatpush2.msra.mxu0 0.0
    %1372 = vmatprep.subr.mxu0 0.0
    %1373 = vmatpush2.msra.mxu0 0.0
    %1374 = vmatprep.subr.mxu0 0.0
    %1375 = vmatpush2.msra.mxu0 0.0
    %1376 = vmatprep.subr.mxu0 0.0
    %1377 = vmatpush2.msra.mxu0 0.0
    %1378 = vmatprep.subr.mxu0 0.0
    %1379 = vmatpush2.msra.mxu0 0.0
    %1380 = vmatprep.subr.mxu0 0.0
    %1381 = vmatpush2.msra.mxu0 0.0
    %1382 = vmatprep.subr.mxu0 0.0
    %1383 = vmatpush2.msra.mxu0 0.0
    %1384 = vmatprep.subr.mxu0 0.0
    %1385 = vmatpush2.msra.mxu0 0.0
    %1386 = vmatprep.subr.mxu0 0.0
    %1387 = vmatpush2.msra.mxu0 0.0
    %1388 = vmatprep.mubr.f32.mxu0 0.0
    %1389 = vmatmul.mubr.f32.gmra.mxu0 %v1250
    %v1390 = vpop.f32.mrf.mxu0
    %v1391 = vadd.f32 0.0, %v1390
    %v1392 = vpop.f32.mrf.mxu0
    %1393 = vdwg.mxu0
    %v1394 = vadd.f32 %v198, %v1391
    %v1395 = vtanh.pop %v1394
    %v1397 = vsel %vm214, %v1323, 0
    %1399 = vmatprep.subr.mxu0 0.0
    %1400 = vmatpush1.msra.mxu0 0.0
    %1401 = vmatprep.subr.mxu0 0.0
    %1402 = vmatpush1.msra.mxu0 0.0
    %1403 = vmatprep.subr.mxu0 0.0
    %1404 = vmatpush1.msra.mxu0 0.0
    %1405 = vmatprep.subr.mxu0 0.0
    %1406 = vmatpush1.msra.mxu0 0.0
    %1407 = vmatprep.subr.mxu0 0.0
    %1408 = vmatpush1.msra.mxu0 0.0
    %1409 = vmatprep.subr.mxu0 0.0
    %1410 = vmatpush1.msra.mxu0 0.0
    %1411 = vmatprep.subr.mxu0 0.0
    %1412 = vmatpush1.msra.mxu0 0.0
    %1413 = vmatprep.subr.mxu0 0.0
    %1414 = vmatpush1.msra.mxu0 0.0
    %1415 = vmatprep.subr.mxu0 0.0
    %1416 = vmatpush1.msra.mxu0 0.0
    %1417 = vmatprep.subr.mxu0 0.0
    %1418 = vmatpush1.msra.mxu0 0.0
    %1419 = vmatprep.subr.mxu0 0.0
    %1420 = vmatpush1.msra.mxu0 0.0
    %1421 = vmatprep.subr.mxu0 0.0
    %1422 = vmatpush1.msra.mxu0 0.0
    %1423 = vmatprep.subr.mxu0 0.0
    %1424 = vmatpush1.msra.mxu0 %v64
    %1425 = vmatprep.subr.mxu0 0.0
    %1426 = vmatpush1.msra.mxu0 %v63
    %1427 = vmatprep.subr.mxu0 0.0
    %1428 = vmatpush1.msra.mxu0 %v62
    %1429 = vmatprep.subr.mxu0 0.0
    %1430 = vmatpush1.msra.mxu0 %v61
    %1431 = vmatprep.subr.mxu0 0.0
    %1432 = vmatpush2.msra.mxu0 0.0
    %1433 = vmatprep.subr.mxu0 0.0
    %1434 = vmatpush2.msra.mxu0 0.0
    %1435 = vmatprep.subr.mxu0 0.0
    %1436 = vmatpush2.msra.mxu0 0.0
    %1437 = vmatprep.subr.mxu0 0.0
    %1438 = vmatpush2.msra.mxu0 0.0
    %1439 = vmatprep.subr.mxu0 0.0
    %1440 = vmatpush2.msra.mxu0 0.0
    %1441 = vmatprep.subr.mxu0 0.0
    %1442 = vmatpush2.msra.mxu0 0.0
    %1443 = vmatprep.subr.mxu0 0.0
    %1444 = vmatpush2.msra.mxu0 0.0
    %1445 = vmatprep.subr.mxu0 0.0
    %1446 = vmatpush2.msra.mxu0 0.0
    %1447 = vmatprep.subr.mxu0 0.0
    %1448 = vmatpush2.msra.mxu0 0.0
    %1449 = vmatprep.subr.mxu0 0.0
    %1450 = vmatpush2.msra.mxu0 0.0
    %1451 = vmatprep.subr.mxu0 0.0
    %1452 = vmatpush2.msra.mxu0 0.0
    %1453 = vmatprep.subr.mxu0 0.0
    %1454 = vmatpush2.msra.mxu0 0.0
    %1455 = vmatprep.subr.mxu0 0.0
    %1456 = vmatpush2.msra.mxu0 0.0
    %1457 = vmatprep.subr.mxu0 0.0
    %1458 = vmatpush2.msra.mxu0 0.0
    %1459 = vmatprep.subr.mxu0 0.0
    %1460 = vmatpush2.msra.mxu0 0.0
    %1461 = vmatprep.subr.mxu0 0.0
    %1462 = vmatpush2.msra.mxu0 0.0
    %1463 = vmatprep.mubr.f32.mxu0 0.0
    %1464 = vmatmul.mubr.f32.gmra.mxu0 %v1397
    %v1465 = vpop.f32.mrf.mxu0
    %v1466 = vadd.f32 0.0, %v1465
    %v1467 = vpop.f32.mrf.mxu0
    %1468 = vdwg.mxu0
    %v1470 = vsel %vm214, %v1395, 0
    %1472 = vmatprep.subr.mxu0 0.0
    %1473 = vmatpush1.msra.mxu0 0.0
    %1474 = vmatprep.subr.mxu0 0.0
    %1475 = vmatpush1.msra.mxu0 0.0
    %1476 = vmatprep.subr.mxu0 0.0
    %1477 = vmatpush1.msra.mxu0 0.0
    %1478 = vmatprep.subr.mxu0 0.0
    %1479 = vmatpush1.msra.mxu0 0.0
    %1480 = vmatprep.subr.mxu0 0.0
    %1481 = vmatpush1.msra.mxu0 0.0
    %1482 = vmatprep.subr.mxu0 0.0
    %1483 = vmatpush1.msra.mxu0 0.0
    %1484 = vmatprep.subr.mxu0 0.0
    %1485 = vmatpush1.msra.mxu0 0.0
    %1486 = vmatprep.subr.mxu0 0.0
    %1487 = vmatpush1.msra.mxu0 0.0
    %1488 = vmatprep.subr.mxu0 0.0
    %1489 = vmatpush1.msra.mxu0 0.0
    %1490 = vmatprep.subr.mxu0 0.0
    %1491 = vmatpush1.msra.mxu0 0.0
    %1492 = vmatprep.subr.mxu0 0.0
    %1493 = vmatpush1.msra.mxu0 0.0
    %1494 = vmatprep.subr.mxu0 0.0
    %1495 = vmatpush1.msra.mxu0 0.0
    %1496 = vmatprep.subr.mxu0 0.0
    %1497 = vmatpush1.msra.mxu0 %v56
    %1498 = vmatprep.subr.mxu0 0.0
    %1499 = vmatpush1.msra.mxu0 %v55
    %1500 = vmatprep.subr.mxu0 0.0
    %1501 = vmatpush1.msra.mxu0 %v54
    %1502 = vmatprep.subr.mxu0 0.0
    %1503 = vmatpush1.msra.mxu0 %v53
    %1504 = vmatprep.subr.mxu0 0.0
    %1505 = vmatpush2.msra.mxu0 0.0
    %1506 = vmatprep.subr.mxu0 0.0
    %1507 = vmatpush2.msra.mxu0 0.0
    %1508 = vmatprep.subr.mxu0 0.0
    %1509 = vmatpush2.msra.mxu0 0.0
    %1510 = vmatprep.subr.mxu0 0.0
    %1511 = vmatpush2.msra.mxu0 0.0
    %1512 = vmatprep.subr.mxu0 0.0
    %1513 = vmatpush2.msra.mxu0 0.0
    %1514 = vmatprep.subr.mxu0 0.0
    %1515 = vmatpush2.msra.mxu0 0.0
    %1516 = vmatprep.subr.mxu0 0.0
    %1517 = vmatpush2.msra.mxu0 0.0
    %1518 = vmatprep.subr.mxu0 0.0
    %1519 = vmatpush2.msra.mxu0 0.0
    %1520 = vmatprep.subr.mxu0 0.0
    %1521 = vmatpush2.msra.mxu0 0.0
    %1522 = vmatprep.subr.mxu0 0.0
    %1523 = vmatpush2.msra.mxu0 0.0
    %1524 = vmatprep.subr.mxu0 0.0
    %1525 = vmatpush2.msra.mxu0 0.0
    %1526 = vmatprep.subr.mxu0 0.0
    %1527 = vmatpush2.msra.mxu0 0.0
    %1528 = vmatprep.subr.mxu0 0.0
    %1529 = vmatpush2.msra.mxu0 0.0
    %1530 = vmatprep.subr.mxu0 0.0
    %1531 = vmatpush2.msra.mxu0 0.0
    %1532 = vmatprep.subr.mxu0 0.0
    %1533 = vmatpush2.msra.mxu0 0.0
    %1534 = vmatprep.subr.mxu0 0.0
    %1535 = vmatpush2.msra.mxu0 0.0
    %1536 = vmatprep.mubr.f32.mxu0 0.0
    %1537 = vmatmul.mubr.f32.gmra.mxu0 %v1470
    %v1538 = vpop.f32.mrf.mxu0
    %v1539 = vadd.f32 %v1466, %v1538
    %v1540 = vpop.f32.mrf.mxu0
    %1541 = vdwg.mxu0
    %v1542 = vadd.f32 %v1539, %v440
    %v1543 = vtanh.pop %v1542
    %1544 = vmatprep.subr.mxu0 0.0
    %1545 = vmatpush1.msra.mxu0 0.0
    %1546 = vmatprep.subr.mxu0 0.0
    %1547 = vmatpush1.msra.mxu0 0.0
    %1548 = vmatprep.subr.mxu0 0.0
    %1549 = vmatpush1.msra.mxu0 0.0
    %1550 = vmatprep.subr.mxu0 0.0
    %1551 = vmatpush1.msra.mxu0 0.0
    %1552 = vmatprep.subr.mxu0 0.0
    %1553 = vmatpush1.msra.mxu0 0.0
    %1554 = vmatprep.subr.mxu0 0.0
    %1555 = vmatpush1.msra.mxu0 0.0
    %1556 = vmatprep.subr.mxu0 0.0
    %1557 = vmatpush1.msra.mxu0 0.0
    %1558 = vmatprep.subr.mxu0 0.0
    %1559 = vmatpush1.msra.mxu0 0.0
    %1560 = vmatprep.subr.mxu0 0.0
    %1561 = vmatpush1.msra.mxu0 0.0
    %1562 = vmatprep.subr.mxu0 0.0
    %1563 = vmatpush1.msra.mxu0 0.0
    %1564 = vmatprep.subr.mxu0 0.0
    %1565 = vmatpush1.msra.mxu0 0.0
    %1566 = vmatprep.subr.mxu0 0.0
    %1567 = vmatpush1.msra.mxu0 0.0
    %1568 = vmatprep.subr.mxu0 0.0
    %1569 = vmatpush1.msra.mxu0 %v60
    %1570 = vmatprep.subr.mxu0 0.0
    %1571 = vmatpush1.msra.mxu0 %v59
    %1572 = vmatprep.subr.mxu0 0.0
    %1573 = vmatpush1.msra.mxu0 %v58
    %1574 = vmatprep.subr.mxu0 0.0
    %1575 = vmatpush1.msra.mxu0 %v57
    %1576 = vmatprep.subr.mxu0 0.0
    %1577 = vmatpush2.msra.mxu0 0.0
    %1578 = vmatprep.subr.mxu0 0.0
    %1579 = vmatpush2.msra.mxu0 0.0
    %1580 = vmatprep.subr.mxu0 0.0
    %1581 = vmatpush2.msra.mxu0 0.0
    %1582 = vmatprep.subr.mxu0 0.0
    %1583 = vmatpush2.msra.mxu0 0.0
    %1584 = vmatprep.subr.mxu0 0.0
    %1585 = vmatpush2.msra.mxu0 0.0
    %1586 = vmatprep.subr.mxu0 0.0
    %1587 = vmatpush2.msra.mxu0 0.0
    %1588 = vmatprep.subr.mxu0 0.0
    %1589 = vmatpush2.msra.mxu0 0.0
    %1590 = vmatprep.subr.mxu0 0.0
    %1591 = vmatpush2.msra.mxu0 0.0
    %1592 = vmatprep.subr.mxu0 0.0
    %1593 = vmatpush2.msra.mxu0 0.0
    %1594 = vmatprep.subr.mxu0 0.0
    %1595 = vmatpush2.msra.mxu0 0.0
    %1596 = vmatprep.subr.mxu0 0.0
    %1597 = vmatpush2.msra.mxu0 0.0
    %1598 = vmatprep.subr.mxu0 0.0
    %1599 = vmatpush2.msra.mxu0 0.0
    %1600 = vmatprep.subr.mxu0 0.0
    %1601 = vmatpush2.msra.mxu0 0.0
    %1602 = vmatprep.subr.mxu0 0.0
    %1603 = vmatpush2.msra.mxu0 0.0
    %1604 = vmatprep.subr.mxu0 0.0
    %1605 = vmatpush2.msra.mxu0 0.0
    %1606 = vmatprep.subr.mxu0 0.0
    %1607 = vmatpush2.msra.mxu0 0.0
    %1608 = vmatprep.mubr.f32.mxu0 0.0
    %1609 = vmatmul.mubr.f32.gmra.mxu0 %v1470
    %v1610 = vpop.f32.mrf.mxu0
    %v1611 = vadd.f32 0.0, %v1610
    %v1612 = vpop.f32.mrf.mxu0
    %1613 = vdwg.mxu0
    %v1614 = vadd.f32 %v203, %v1611
    %v1615 = vtanh.pop %v1614
    %v1617 = vsel %vm214, %v1543, 0
    %1619 = vmatprep.subr.mxu0 0.0
    %1620 = vmatpush1.msra.mxu0 0.0
    %1621 = vmatprep.subr.mxu0 0.0
    %1622 = vmatpush1.msra.mxu0 0.0
    %1623 = vmatprep.subr.mxu0 0.0
    %1624 = vmatpush1.msra.mxu0 0.0
    %1625 = vmatprep.subr.mxu0 0.0
    %1626 = vmatpush1.msra.mxu0 0.0
    %1627 = vmatprep.subr.mxu0 0.0
    %1628 = vmatpush1.msra.mxu0 0.0
    %1629 = vmatprep.subr.mxu0 0.0
    %1630 = vmatpush1.msra.mxu0 0.0
    %1631 = vmatprep.subr.mxu0 0.0
    %1632 = vmatpush1.msra.mxu0 0.0
    %1633 = vmatprep.subr.mxu0 0.0
    %1634 = vmatpush1.msra.mxu0 0.0
    %1635 = vmatprep.subr.mxu0 0.0
    %1636 = vmatpush1.msra.mxu0 0.0
    %1637 = vmatprep.subr.mxu0 0.0
    %1638 = vmatpush1.msra.mxu0 0.0
    %1639 = vmatprep.subr.mxu0 0.0
    %1640 = vmatpush1.msra.mxu0 0.0
    %1641 = vmatprep.subr.mxu0 0.0
    %1642 = vmatpush1.msra.mxu0 0.0
    %1643 = vmatprep.subr.mxu0 0.0
    %1644 = vmatpush1.msra.mxu0 %v64
    %1645 = vmatprep.subr.mxu0 0.0
    %1646 = vmatpush1.msra.mxu0 %v63
    %1647 = vmatprep.subr.mxu0 0.0
    %1648 = vmatpush1.msra.mxu0 %v62
    %1649 = vmatprep.subr.mxu0 0.0
    %1650 = vmatpush1.msra.mxu0 %v61
    %1651 = vmatprep.subr.mxu0 0.0
    %1652 = vmatpush2.msra.mxu0 0.0
    %1653 = vmatprep.subr.mxu0 0.0
    %1654 = vmatpush2.msra.mxu0 0.0
    %1655 = vmatprep.subr.mxu0 0.0
    %1656 = vmatpush2.msra.mxu0 0.0
    %1657 = vmatprep.subr.mxu0 0.0
    %1658 = vmatpush2.msra.mxu0 0.0
    %1659 = vmatprep.subr.mxu0 0.0
    %1660 = vmatpush2.msra.mxu0 0.0
    %1661 = vmatprep.subr.mxu0 0.0
    %1662 = vmatpush2.msra.mxu0 0.0
    %1663 = vmatprep.subr.mxu0 0.0
    %1664 = vmatpush2.msra.mxu0 0.0
    %1665 = vmatprep.subr.mxu0 0.0
    %1666 = vmatpush2.msra.mxu0 0.0
    %1667 = vmatprep.subr.mxu0 0.0
    %1668 = vmatpush2.msra.mxu0 0.0
    %1669 = vmatprep.subr.mxu0 0.0
    %1670 = vmatpush2.msra.mxu0 0.0
    %1671 = vmatprep.subr.mxu0 0.0
    %1672 = vmatpush2.msra.mxu0 0.0
    %1673 = vmatprep.subr.mxu0 0.0
    %1674 = vmatpush2.msra.mxu0 0.0
    %1675 = vmatprep.subr.mxu0 0.0
    %1676 = vmatpush2.msra.mxu0 0.0
    %1677 = vmatprep.subr.mxu0 0.0
    %1678 = vmatpush2.msra.mxu0 0.0
    %1679 = vmatprep.subr.mxu0 0.0
    %1680 = vmatpush2.msra.mxu0 0.0
    %1681 = vmatprep.subr.mxu0 0.0
    %1682 = vmatpush2.msra.mxu0 0.0
    %1683 = vmatprep.mubr.f32.mxu0 0.0
    %1684 = vmatmul.mubr.f32.gmra.mxu0 %v1617
    %v1685 = vpop.f32.mrf.mxu0
    %v1686 = vadd.f32 0.0, %v1685
    %v1687 = vpop.f32.mrf.mxu0
    %1688 = vdwg.mxu0
    %v1690 = vsel %vm214, %v1615, 0
    %1692 = vmatprep.subr.mxu0 0.0
    %1693 = vmatpush1.msra.mxu0 0.0
    %1694 = vmatprep.subr.mxu0 0.0
    %1695 = vmatpush1.msra.mxu0 0.0
    %1696 = vmatprep.subr.mxu0 0.0
    %1697 = vmatpush1.msra.mxu0 0.0
    %1698 = vmatprep.subr.mxu0 0.0
    %1699 = vmatpush1.msra.mxu0 0.0
    %1700 = vmatprep.subr.mxu0 0.0
    %1701 = vmatpush1.msra.mxu0 0.0
    %1702 = vmatprep.subr.mxu0 0.0
    %1703 = vmatpush1.msra.mxu0 0.0
    %1704 = vmatprep.subr.mxu0 0.0
    %1705 = vmatpush1.msra.mxu0 0.0
    %1706 = vmatprep.subr.mxu0 0.0
    %1707 = vmatpush1.msra.mxu0 0.0
    %1708 = vmatprep.subr.mxu0 0.0
    %1709 = vmatpush1.msra.mxu0 0.0
    %1710 = vmatprep.subr.mxu0 0.0
    %1711 = vmatpush1.msra.mxu0 0.0
    %1712 = vmatprep.subr.mxu0 0.0
    %1713 = vmatpush1.msra.mxu0 0.0
    %1714 = vmatprep.subr.mxu0 0.0
    %1715 = vmatpush1.msra.mxu0 0.0
    %1716 = vmatprep.subr.mxu0 0.0
    %1717 = vmatpush1.msra.mxu0 %v56
    %1718 = vmatprep.subr.mxu0 0.0
    %1719 = vmatpush1.msra.mxu0 %v55
    %1720 = vmatprep.subr.mxu0 0.0
    %1721 = vmatpush1.msra.mxu0 %v54
    %1722 = vmatprep.subr.mxu0 0.0
    %1723 = vmatpush1.msra.mxu0 %v53
    %1724 = vmatprep.subr.mxu0 0.0
    %1725 = vmatpush2.msra.mxu0 0.0
    %1726 = vmatprep.subr.mxu0 0.0
    %1727 = vmatpush2.msra.mxu0 0.0
    %1728 = vmatprep.subr.mxu0 0.0
    %1729 = vmatpush2.msra.mxu0 0.0
    %1730 = vmatprep.subr.mxu0 0.0
    %1731 = vmatpush2.msra.mxu0 0.0
    %1732 = vmatprep.subr.mxu0 0.0
    %1733 = vmatpush2.msra.mxu0 0.0
    %1734 = vmatprep.subr.mxu0 0.0
    %1735 = vmatpush2.msra.mxu0 0.0
    %1736 = vmatprep.subr.mxu0 0.0
    %1737 = vmatpush2.msra.mxu0 0.0
    %1738 = vmatprep.subr.mxu0 0.0
    %1739 = vmatpush2.msra.mxu0 0.0
    %1740 = vmatprep.subr.mxu0 0.0
    %1741 = vmatpush2.msra.mxu0 0.0
    %1742 = vmatprep.subr.mxu0 0.0
    %1743 = vmatpush2.msra.mxu0 0.0
    %1744 = vmatprep.subr.mxu0 0.0
    %1745 = vmatpush2.msra.mxu0 0.0
    %1746 = vmatprep.subr.mxu0 0.0
    %1747 = vmatpush2.msra.mxu0 0.0
    %1748 = vmatprep.subr.mxu0 0.0
    %1749 = vmatpush2.msra.mxu0 0.0
    %1750 = vmatprep.subr.mxu0 0.0
    %1751 = vmatpush2.msra.mxu0 0.0
    %1752 = vmatprep.subr.mxu0 0.0
    %1753 = vmatpush2.msra.mxu0 0.0
    %1754 = vmatprep.subr.mxu0 0.0
    %1755 = vmatpush2.msra.mxu0 0.0
    %1756 = vmatprep.mubr.f32.mxu0 0.0
    %1757 = vmatmul.mubr.f32.gmra.mxu0 %v1690
    %v1758 = vpop.f32.mrf.mxu0
    %v1759 = vadd.f32 %v1686, %v1758
    %v1760 = vpop.f32.mrf.mxu0
    %1761 = vdwg.mxu0
    %v1762 = vadd.f32 %v1759, %v440
    %v1763 = vtanh.pop %v1762
    %1764 = vmatprep.subr.mxu0 0.0
    %1765 = vmatpush1.msra.mxu0 0.0
    %1766 = vmatprep.subr.mxu0 0.0
    %1767 = vmatpush1.msra.mxu0 0.0
    %1768 = vmatprep.subr.mxu0 0.0
    %1769 = vmatpush1.msra.mxu0 0.0
    %1770 = vmatprep.subr.mxu0 0.0
    %1771 = vmatpush1.msra.mxu0 0.0
    %1772 = vmatprep.subr.mxu0 0.0
    %1773 = vmatpush1.msra.mxu0 0.0
    %1774 = vmatprep.subr.mxu0 0.0
    %1775 = vmatpush1.msra.mxu0 0.0
    %1776 = vmatprep.subr.mxu0 0.0
    %1777 = vmatpush1.msra.mxu0 0.0
    %1778 = vmatprep.subr.mxu0 0.0
    %1779 = vmatpush1.msra.mxu0 0.0
    %1780 = vmatprep.subr.mxu0 0.0
    %1781 = vmatpush1.msra.mxu0 0.0
    %1782 = vmatprep.subr.mxu0 0.0
    %1783 = vmatpush1.msra.mxu0 0.0
    %1784 = vmatprep.subr.mxu0 0.0
    %1785 = vmatpush1.msra.mxu0 0.0
    %1786 = vmatprep.subr.mxu0 0.0
    %1787 = vmatpush1.msra.mxu0 0.0
    %1788 = vmatprep.subr.mxu0 0.0
    %1789 = vmatpush1.msra.mxu0 %v60
    %1790 = vmatprep.subr.mxu0 0.0
    %1791 = vmatpush1.msra.mxu0 %v59
    %1792 = vmatprep.subr.mxu0 0.0
    %1793 = vmatpush1.msra.mxu0 %v58
    %1794 = vmatprep.subr.mxu0 0.0
    %1795 = vmatpush1.msra.mxu0 %v57
    %1796 = vmatprep.subr.mxu0 0.0
    %1797 = vmatpush2.msra.mxu0 0.0
    %1798 = vmatprep.subr.mxu0 0.0
    %1799 = vmatpush2.msra.mxu0 0.0
    %1800 = vmatprep.subr.mxu0 0.0
    %1801 = vmatpush2.msra.mxu0 0.0
    %1802 = vmatprep.subr.mxu0 0.0
    %1803 = vmatpush2.msra.mxu0 0.0
    %1804 = vmatprep.subr.mxu0 0.0
    %1805 = vmatpush2.msra.mxu0 0.0
    %1806 = vmatprep.subr.mxu0 0.0
    %1807 = vmatpush2.msra.mxu0 0.0
    %1808 = vmatprep.subr.mxu0 0.0
    %1809 = vmatpush2.msra.mxu0 0.0
    %1810 = vmatprep.subr.mxu0 0.0
    %1811 = vmatpush2.msra.mxu0 0.0
    %1812 = vmatprep.subr.mxu0 0.0
    %1813 = vmatpush2.msra.mxu0 0.0
    %1814 = vmatprep.subr.mxu0 0.0
    %1815 = vmatpush2.msra.mxu0 0.0
    %1816 = vmatprep.subr.mxu0 0.0
    %1817 = vmatpush2.msra.mxu0 0.0
    %1818 = vmatprep.subr.mxu0 0.0
    %1819 = vmatpush2.msra.mxu0 0.0
    %1820 = vmatprep.subr.mxu0 0.0
    %1821 = vmatpush2.msra.mxu0 0.0
    %1822 = vmatprep.subr.mxu0 0.0
    %1823 = vmatpush2.msra.mxu0 0.0
    %1824 = vmatprep.subr.mxu0 0.0
    %1825 = vmatpush2.msra.mxu0 0.0
    %1826 = vmatprep.subr.mxu0 0.0
    %1827 = vmatpush2.msra.mxu0 0.0
    %1828 = vmatprep.mubr.f32.mxu0 0.0
    %1829 = vmatmul.mubr.f32.gmra.mxu0 %v1690
    %v1830 = vpop.f32.mrf.mxu0
    %v1831 = vadd.f32 0.0, %v1830
    %v1832 = vpop.f32.mrf.mxu0
    %1833 = vdwg.mxu0
    %v1834 = vadd.f32 %v208, %v1831
    %v1835 = vtanh.pop %v1834
    %v1837 = vsel %vm214, %v1763, 0
    %1839 = vmatprep.subr.mxu0 0.0
    %1840 = vmatpush1.msra.mxu0 0.0
    %1841 = vmatprep.subr.mxu0 0.0
    %1842 = vmatpush1.msra.mxu0 0.0
    %1843 = vmatprep.subr.mxu0 0.0
    %1844 = vmatpush1.msra.mxu0 0.0
    %1845 = vmatprep.subr.mxu0 0.0
    %1846 = vmatpush1.msra.mxu0 0.0
    %1847 = vmatprep.subr.mxu0 0.0
    %1848 = vmatpush1.msra.mxu0 0.0
    %1849 = vmatprep.subr.mxu0 0.0
    %1850 = vmatpush1.msra.mxu0 0.0
    %1851 = vmatprep.subr.mxu0 0.0
    %1852 = vmatpush1.msra.mxu0 0.0
    %1853 = vmatprep.subr.mxu0 0.0
    %1854 = vmatpush1.msra.mxu0 0.0
    %1855 = vmatprep.subr.mxu0 0.0
    %1856 = vmatpush1.msra.mxu0 0.0
    %1857 = vmatprep.subr.mxu0 0.0
    %1858 = vmatpush1.msra.mxu0 0.0
    %1859 = vmatprep.subr.mxu0 0.0
    %1860 = vmatpush1.msra.mxu0 0.0
    %1861 = vmatprep.subr.mxu0 0.0
    %1862 = vmatpush1.msra.mxu0 0.0
    %1863 = vmatprep.subr.mxu0 0.0
    %1864 = vmatpush1.msra.mxu0 %v64
    %1865 = vmatprep.subr.mxu0 0.0
    %1866 = vmatpush1.msra.mxu0 %v63
    %1867 = vmatprep.subr.mxu0 0.0
    %1868 = vmatpush1.msra.mxu0 %v62
    %1869 = vmatprep.subr.mxu0 0.0
    %1870 = vmatpush1.msra.mxu0 %v61
    %1871 = vmatprep.subr.mxu0 0.0
    %1872 = vmatpush2.msra.mxu0 0.0
    %1873 = vmatprep.subr.mxu0 0.0
    %1874 = vmatpush2.msra.mxu0 0.0
    %1875 = vmatprep.subr.mxu0 0.0
    %1876 = vmatpush2.msra.mxu0 0.0
    %1877 = vmatprep.subr.mxu0 0.0
    %1878 = vmatpush2.msra.mxu0 0.0
    %1879 = vmatprep.subr.mxu0 0.0
    %1880 = vmatpush2.msra.mxu0 0.0
    %1881 = vmatprep.subr.mxu0 0.0
    %1882 = vmatpush2.msra.mxu0 0.0
    %1883 = vmatprep.subr.mxu0 0.0
    %1884 = vmatpush2.msra.mxu0 0.0
    %1885 = vmatprep.subr.mxu0 0.0
    %1886 = vmatpush2.msra.mxu0 0.0
    %1887 = vmatprep.subr.mxu0 0.0
    %1888 = vmatpush2.msra.mxu0 0.0
    %1889 = vmatprep.subr.mxu0 0.0
    %1890 = vmatpush2.msra.mxu0 0.0
    %1891 = vmatprep.subr.mxu0 0.0
    %1892 = vmatpush2.msra.mxu0 0.0
    %1893 = vmatprep.subr.mxu0 0.0
    %1894 = vmatpush2.msra.mxu0 0.0
    %1895 = vmatprep.subr.mxu0 0.0
    %1896 = vmatpush2.msra.mxu0 0.0
    %1897 = vmatprep.subr.mxu0 0.0
    %1898 = vmatpush2.msra.mxu0 0.0
    %1899 = vmatprep.subr.mxu0 0.0
    %1900 = vmatpush2.msra.mxu0 0.0
    %1901 = vmatprep.subr.mxu0 0.0
    %1902 = vmatpush2.msra.mxu0 0.0
    %1903 = vmatprep.mubr.f32.mxu0 0.0
    %1904 = vmatmul.mubr.f32.gmra.mxu0 %v1837
    %v1905 = vpop.f32.mrf.mxu0
    %v1906 = vadd.f32 0.0, %v1905
    %v1907 = vpop.f32.mrf.mxu0
    %1908 = vdwg.mxu0
    %v1910 = vsel %vm214, %v1835, 0
    %1912 = vmatprep.subr.mxu0 0.0
    %1913 = vmatpush1.msra.mxu0 0.0
    %1914 = vmatprep.subr.mxu0 0.0
    %1915 = vmatpush1.msra.mxu0 0.0
    %1916 = vmatprep.subr.mxu0 0.0
    %1917 = vmatpush1.msra.mxu0 0.0
    %1918 = vmatprep.subr.mxu0 0.0
    %1919 = vmatpush1.msra.mxu0 0.0
    %1920 = vmatprep.subr.mxu0 0.0
    %1921 = vmatpush1.msra.mxu0 0.0
    %1922 = vmatprep.subr.mxu0 0.0
    %1923 = vmatpush1.msra.mxu0 0.0
    %1924 = vmatprep.subr.mxu0 0.0
    %1925 = vmatpush1.msra.mxu0 0.0
    %1926 = vmatprep.subr.mxu0 0.0
    %1927 = vmatpush1.msra.mxu0 0.0
    %1928 = vmatprep.subr.mxu0 0.0
    %1929 = vmatpush1.msra.mxu0 0.0
    %1930 = vmatprep.subr.mxu0 0.0
    %1931 = vmatpush1.msra.mxu0 0.0
    %1932 = vmatprep.subr.mxu0 0.0
    %1933 = vmatpush1.msra.mxu0 0.0
    %1934 = vmatprep.subr.mxu0 0.0
    %1935 = vmatpush1.msra.mxu0 0.0
    %1936 = vmatprep.subr.mxu0 0.0
    %1937 = vmatpush1.msra.mxu0 %v56
    %1938 = vmatprep.subr.mxu0 0.0
    %1939 = vmatpush1.msra.mxu0 %v55
    %1940 = vmatprep.subr.mxu0 0.0
    %1941 = vmatpush1.msra.mxu0 %v54
    %1942 = vmatprep.subr.mxu0 0.0
    %1943 = vmatpush1.msra.mxu0 %v53
    %1944 = vmatprep.subr.mxu0 0.0
    %1945 = vmatpush2.msra.mxu0 0.0
    %1946 = vmatprep.subr.mxu0 0.0
    %1947 = vmatpush2.msra.mxu0 0.0
    %1948 = vmatprep.subr.mxu0 0.0
    %1949 = vmatpush2.msra.mxu0 0.0
    %1950 = vmatprep.subr.mxu0 0.0
    %1951 = vmatpush2.msra.mxu0 0.0
    %1952 = vmatprep.subr.mxu0 0.0
    %1953 = vmatpush2.msra.mxu0 0.0
    %1954 = vmatprep.subr.mxu0 0.0
    %1955 = vmatpush2.msra.mxu0 0.0
    %1956 = vmatprep.subr.mxu0 0.0
    %1957 = vmatpush2.msra.mxu0 0.0
    %1958 = vmatprep.subr.mxu0 0.0
    %1959 = vmatpush2.msra.mxu0 0.0
    %1960 = vmatprep.subr.mxu0 0.0
    %1961 = vmatpush2.msra.mxu0 0.0
    %1962 = vmatprep.subr.mxu0 0.0
    %1963 = vmatpush2.msra.mxu0 0.0
    %1964 = vmatprep.subr.mxu0 0.0
    %1965 = vmatpush2.msra.mxu0 0.0
    %1966 = vmatprep.subr.mxu0 0.0
    %1967 = vmatpush2.msra.mxu0 0.0
    %1968 = vmatprep.subr.mxu0 0.0
    %1969 = vmatpush2.msra.mxu0 0.0
    %1970 = vmatprep.subr.mxu0 0.0
    %1971 = vmatpush2.msra.mxu0 0.0
    %1972 = vmatprep.subr.mxu0 0.0
    %1973 = vmatpush2.msra.mxu0 0.0
    %1974 = vmatprep.subr.mxu0 0.0
    %1975 = vmatpush2.msra.mxu0 0.0
    %1976 = vmatprep.mubr.f32.mxu0 0.0
    %1977 = vmatmul.mubr.f32.gmra.mxu0 %v1910
    %v1978 = vpop.f32.mrf.mxu0
    %v1979 = vadd.f32 %v1906, %v1978
    %v1980 = vpop.f32.mrf.mxu0
    %1981 = vdwg.mxu0
    %v1982 = vadd.f32 %v1979, %v440
    %v1983 = vtanh.pop %v1982
    %1984 = vst.msk [vmem:[%s11] sm:$0xff] %vm214, %v1835
    %s1985 = scalar_lea.vmem %s11, 8
    %1986 = vst.msk [vmem:[%s1985] sm:$0xff] %vm214, %v1983
    %v1987 = vld [vmem:[%s8] sm:$0xff]
    %v1988 = vld [vmem:[%s8 + $0x8] sm:$0xff]
    %v1989 = vld [vmem:[%s8 + $0x10] sm:$0xff]
    %v1990 = vld [vmem:[%s8 + $0x18] sm:$0xff]
    %v1991 = vld [vmem:[%s9] sm:$0x1]
    %v1993 = vlaneseq
    %v1994 = vshrl.u32 %v1993, 7
    %v1995 = vsub.s32 0, %v1994
    %v1996 = vrot.slane %v1991, %v1995
    %v1999 = vsel %vm214, %v1983, 0
    %2001 = vmatprep.subr.mxu0 0.0
    %2002 = vmatpush1.msra.mxu0 0.0
    %2003 = vmatprep.subr.mxu0 0.0
    %2004 = vmatpush1.msra.mxu0 0.0
    %2005 = vmatprep.subr.mxu0 0.0
    %2006 = vmatpush1.msra.mxu0 0.0
    %2007 = vmatprep.subr.mxu0 0.0
    %2008 = vmatpush1.msra.mxu0 0.0
    %2009 = vmatprep.subr.mxu0 0.0
    %2010 = vmatpush1.msra.mxu0 0.0
    %2011 = vmatprep.subr.mxu0 0.0
    %2012 = vmatpush1.msra.mxu0 0.0
    %2013 = vmatprep.subr.mxu0 0.0
    %2014 = vmatpush1.msra.mxu0 0.0
    %2015 = vmatprep.subr.mxu0 0.0
    %2016 = vmatpush1.msra.mxu0 0.0
    %2017 = vmatprep.subr.mxu0 0.0
    %2018 = vmatpush1.msra.mxu0 0.0
    %2019 = vmatprep.subr.mxu0 0.0
    %2020 = vmatpush1.msra.mxu0 0.0
    %2021 = vmatprep.subr.mxu0 0.0
    %2022 = vmatpush1.msra.mxu0 0.0
    %2023 = vmatprep.subr.mxu0 0.0
    %2024 = vmatpush1.msra.mxu0 0.0
    %2025 = vmatprep.subr.mxu0 0.0
    %2026 = vmatpush1.msra.mxu0 %v1990
    %2027 = vmatprep.subr.mxu0 0.0
    %2028 = vmatpush1.msra.mxu0 %v1989
    %2029 = vmatprep.subr.mxu0 0.0
    %2030 = vmatpush1.msra.mxu0 %v1988
    %2031 = vmatprep.subr.mxu0 0.0
    %2032 = vmatpush1.msra.mxu0 %v1987
    %2033 = vmatprep.subr.mxu0 0.0
    %2034 = vmatpush2.msra.mxu0 0.0
    %2035 = vmatprep.subr.mxu0 0.0
    %2036 = vmatpush2.msra.mxu0 0.0
    %2037 = vmatprep.subr.mxu0 0.0
    %2038 = vmatpush2.msra.mxu0 0.0
    %2039 = vmatprep.subr.mxu0 0.0
    %2040 = vmatpush2.msra.mxu0 0.0
    %2041 = vmatprep.subr.mxu0 0.0
    %2042 = vmatpush2.msra.mxu0 0.0
    %2043 = vmatprep.subr.mxu0 0.0
    %2044 = vmatpush2.msra.mxu0 0.0
    %2045 = vmatprep.subr.mxu0 0.0
    %2046 = vmatpush2.msra.mxu0 0.0
    %2047 = vmatprep.subr.mxu0 0.0
    %2048 = vmatpush2.msra.mxu0 0.0
    %2049 = vmatprep.subr.mxu0 0.0
    %2050 = vmatpush2.msra.mxu0 0.0
    %2051 = vmatprep.subr.mxu0 0.0
    %2052 = vmatpush2.msra.mxu0 0.0
    %2053 = vmatprep.subr.mxu0 0.0
    %2054 = vmatpush2.msra.mxu0 0.0
    %2055 = vmatprep.subr.mxu0 0.0
    %2056 = vmatpush2.msra.mxu0 0.0
    %2057 = vmatprep.subr.mxu0 0.0
    %2058 = vmatpush2.msra.mxu0 0.0
    %2059 = vmatprep.subr.mxu0 0.0
    %2060 = vmatpush2.msra.mxu0 0.0
    %2061 = vmatprep.subr.mxu0 0.0
    %2062 = vmatpush2.msra.mxu0 0.0
    %2063 = vmatprep.subr.mxu0 0.0
    %2064 = vmatpush2.msra.mxu0 0.0
    %2065 = vmatprep.mubr.f32.mxu0 0.0
    %2066 = vmatmul.mubr.f32.gmra.mxu0 %v517
    %v2067 = vpop.f32.mrf.mxu0
    %v2068 = vadd.f32 %v1996, %v2067
    %v2069 = vpop.f32.mrf.mxu0
    %2070 = vmatprep.mubr.f32.mxu0 0.0
    %2071 = vmatmul.mubr.f32.gmra.mxu0 %v737
    %v2072 = vpop.f32.mrf.mxu0
    %v2073 = vadd.f32 %v1996, %v2072
    %v2074 = vpop.f32.mrf.mxu0
    %2075 = vmatprep.mubr.f32.mxu0 0.0
    %2076 = vmatmul.mubr.f32.gmra.mxu0 %v957
    %v2077 = vpop.f32.mrf.mxu0
    %v2078 = vadd.f32 %v1996, %v2077
    %v2079 = vpop.f32.mrf.mxu0
    %2080 = vmatprep.mubr.f32.mxu0 0.0
    %2081 = vmatmul.mubr.f32.gmra.mxu0 %v1177
    %v2082 = vpop.f32.mrf.mxu0
    %v2083 = vadd.f32 %v1996, %v2082
    %v2084 = vpop.f32.mrf.mxu0
    %2085 = vmatprep.mubr.f32.mxu0 0.0
    %2086 = vmatmul.mubr.f32.gmra.mxu0 %v1397
    %v2087 = vpop.f32.mrf.mxu0
    %v2088 = vadd.f32 %v1996, %v2087
    %v2089 = vpop.f32.mrf.mxu0
    %2090 = vmatprep.mubr.f32.mxu0 0.0
    %2091 = vmatmul.mubr.f32.gmra.mxu0 %v1617
    %v2092 = vpop.f32.mrf.mxu0
    %v2093 = vadd.f32 %v1996, %v2092
    %v2094 = vpop.f32.mrf.mxu0
    %2095 = vmatprep.mubr.f32.mxu0 0.0
    %2096 = vmatmul.mubr.f32.gmra.mxu0 %v1837
    %v2097 = vpop.f32.mrf.mxu0
    %v2098 = vadd.f32 %v1996, %v2097
    %v2099 = vpop.f32.mrf.mxu0
    %2100 = vmatprep.mubr.f32.mxu0 0.0
    %2101 = vmatmul.mubr.f32.gmra.mxu0 %v1999
    %v2102 = vpop.f32.mrf.mxu0
    %v2103 = vadd.f32 %v1996, %v2102
    %v2104 = vpop.f32.mrf.mxu0
    %2105 = vdwg.mxu0
    %vm2106 = vcmask 64512
    %v2107 = vsel %vm2106, %v2068, -inf
    %2108 = vmax.xlane.f32.xlu0 %v2107
    %v2109 = vpop.xlane.xlu0 %2108
    %v2110 = vsel %vm2106, %v2073, -inf
    %2111 = vmax.xlane.f32.xlu0 %v2110
    %v2112 = vpop.xlane.xlu0 %2111
    %v2113 = vsel %vm2106, %v2078, -inf
    %2114 = vmax.xlane.f32.xlu0 %v2113
    %v2115 = vpop.xlane.xlu0 %2114
    %v2116 = vsel %vm2106, %v2083, -inf
    %2117 = vmax.xlane.f32.xlu0 %v2116
    %v2118 = vpop.xlane.xlu0 %2117
    %v2119 = vsel %vm2106, %v2088, -inf
    %2120 = vmax.xlane.f32.xlu0 %v2119
    %v2121 = vpop.xlane.xlu0 %2120
    %v2122 = vsel %vm2106, %v2093, -inf
    %2123 = vmax.xlane.f32.xlu0 %v2122
    %v2124 = vpop.xlane.xlu0 %2123
    %v2125 = vsel %vm2106, %v2098, -inf
    %2126 = vmax.xlane.f32.xlu0 %v2125
    %v2127 = vpop.xlane.xlu0 %2126
    %v2128 = vsel %vm2106, %v2103, -inf
    %2129 = vmax.xlane.f32.xlu0 %v2128
    %v2130 = vpop.xlane.xlu0 %2129
    %v2131 = vsub.f32 %v2068, %v2109
    %v2132 = vsub.f32 %v2073, %v2112
    %v2133 = vsub.f32 %v2078, %v2115
    %v2134 = vsub.f32 %v2083, %v2118
    %v2135 = vsub.f32 %v2088, %v2121
    %v2136 = vsub.f32 %v2093, %v2124
    %v2137 = vsub.f32 %v2098, %v2127
    %v2138 = vsub.f32 %v2103, %v2130
    %v2139 = vmul.f32 %v2131, 1.442695
    %v2140 = vpow.pop %v2139
    %v2141 = vmul.f32 %v2132, 1.442695
    %v2142 = vpow.pop %v2141
    %v2143 = vmul.f32 %v2133, 1.442695
    %v2144 = vpow.pop %v2143
    %v2145 = vmul.f32 %v2134, 1.442695
    %v2146 = vpow.pop %v2145
    %v2147 = vmul.f32 %v2135, 1.442695
    %v2148 = vpow.pop %v2147
    %v2149 = vmul.f32 %v2136, 1.442695
    %v2150 = vpow.pop %v2149
    %v2151 = vmul.f32 %v2137, 1.442695
    %v2152 = vpow.pop %v2151
    %v2153 = vmul.f32 %v2138, 1.442695
    %v2154 = vpow.pop %v2153
    %v2155 = vsel %vm2106, %v2140, 0.0
    %2156 = vadd.xlane.f32.xlu0 %v2155
    %v2157 = vpop.xlane.xlu0 %2156
    %v2158 = vsel %vm2106, %v2142, 0.0
    %2159 = vadd.xlane.f32.xlu0 %v2158
    %v2160 = vpop.xlane.xlu0 %2159
    %v2161 = vsel %vm2106, %v2144, 0.0
    %2162 = vadd.xlane.f32.xlu0 %v2161
    %v2163 = vpop.xlane.xlu0 %2162
    %v2164 = vsel %vm2106, %v2146, 0.0
    %2165 = vadd.xlane.f32.xlu0 %v2164
    %v2166 = vpop.xlane.xlu0 %2165
    %v2167 = vsel %vm2106, %v2148, 0.0
    %2168 = vadd.xlane.f32.xlu0 %v2167
    %v2169 = vpop.xlane.xlu0 %2168
    %v2170 = vsel %vm2106, %v2150, 0.0
    %2171 = vadd.xlane.f32.xlu0 %v2170
    %v2172 = vpop.xlane.xlu0 %2171
    %v2173 = vsel %vm2106, %v2152, 0.0
    %2174 = vadd.xlane.f32.xlu0 %v2173
    %v2175 = vpop.xlane.xlu0 %2174
    %v2176 = vsel %vm2106, %v2154, 0.0
    %2177 = vadd.xlane.f32.xlu0 %v2176
    %v2178 = vpop.xlane.xlu0 %2177
    %v2179 = vrcp.pop %v2157
    %v2180 = vmul.f32 %v2140, %v2179
    %v2181 = vrcp.pop %v2160
    %v2182 = vmul.f32 %v2142, %v2181
    %v2183 = vrcp.pop %v2163
    %v2184 = vmul.f32 %v2144, %v2183
    %v2185 = vrcp.pop %v2166
    %v2186 = vmul.f32 %v2146, %v2185
    %v2187 = vrcp.pop %v2169
    %v2188 = vmul.f32 %v2148, %v2187
    %v2189 = vrcp.pop %v2172
    %v2190 = vmul.f32 %v2150, %v2189
    %v2191 = vrcp.pop %v2175
    %v2192 = vmul.f32 %v2152, %v2191
    %v2193 = vrcp.pop %v2178
    %v2194 = vmul.f32 %v2154, %v2193
    %2195 = vst.msk [vmem:[%s10] sm:$0xff] %vm2106, %v2180
    %2196 = vst.msk [vmem:[%s10 + $0x8] sm:$0xff] %vm2106, %v2182
    %2197 = vst.msk [vmem:[%s10 + $0x10] sm:$0xff] %vm2106, %v2184
    %2198 = vst.msk [vmem:[%s10 + $0x18] sm:$0xff] %vm2106, %v2186
    %2199 = vst.msk [vmem:[%s10 + $0x20] sm:$0xff] %vm2106, %v2188
    %2200 = vst.msk [vmem:[%s10 + $0x28] sm:$0xff] %vm2106, %v2190
    %2201 = vst.msk [vmem:[%s10 + $0x30] sm:$0xff] %vm2106, %v2192
    %2202 = vst.msk [vmem:[%s10 + $0x38] sm:$0xff] %vm2106, %v2194
    // Predicated region
    $region46: #{_lambda_.1} parent=1 // pred_check
      _
    $region47: #{_lambda_.1} parent=1 // pred_check_branch
      %2204 = sbr.rel (0) target = $region49
    $region48: #{_lambda_.1} parent=1 // pred_region
      _
    $region49: #{_lambda_.1} parent=1 // pred_fallthru
      _
    // Predicated region
    $region50: #{_lambda_.1} parent=1 // pred_check
      _
    $region51: #{_lambda_.1} parent=1 // pred_check_branch
      %2206 = sbr.rel (0) target = $region53
    $region52: #{_lambda_.1} parent=1 // pred_region
      _
    $region53: #{_lambda_.1} parent=1 // pred_fallthru
      _
    // Predicated region
    $region54: #{_lambda_.1} parent=1 // pred_check
      _
    $region55: #{_lambda_.1} parent=1 // pred_check_branch
      %2208 = sbr.rel (0) target = $region57
    $region56: #{_lambda_.1} parent=1 // pred_region
      _
    $region57: #{_lambda_.1} parent=1 // pred_fallthru
      _
    // Predicated region
    $region58: #{_lambda_.1} parent=1 // pred_check
      _
    $region59: #{_lambda_.1} parent=1 // pred_check_branch
      %2210 = sbr.rel (0) target = $region61
    $region60: #{_lambda_.1} parent=1 // pred_region
      _
    $region61: #{_lambda_.1} parent=1 // pred_fallthru
      _
    %2211 = vsyncpa [#allocation3], 1

</llo_original>
